<compile_context>
chip_gen: v7x
topology: tpu7x:2x2x1
jax: 0.10.0
libtpu: 0.0.40
codegen_flags: <defaults>
</compile_context>

<pallas_src>
import functools

import jax
import jax.numpy as jnp
import numpy as np
from jax.experimental import pallas as pl
from jax.experimental.pallas import tpu as pltpu


def _upblock_kernel(xe_ref, skip_ref, wt_ref, bt_ref, pmask_ref, smask_ref,
                    hmask_ref, w1_ref, sc1_ref, sh1_ref, w2_ref, sc2_ref, sh2_ref,
                    o_ref,
                    xes_ref, sks_ref, h1s_ref, im1_ref, im2_ref,
                    *, TB, S, K, P, Es, C_out, L_up, L_skip, off_x, W_c1, W_c2):
    # -- lay the TB batch elements side-by-side (stride Es) inside VMEM slabs.
    #    Only data columns are written; pad/gap columns are never read un-masked,
    #    so the slabs never need a per-step zero fill.
    for e in range(TB):
        b0 = e * Es
        xes_ref[:, b0 + off_x: b0 + off_x + L_up] = xe_ref[e]
        sks_ref[:, b0 + P: b0 + P + L_skip] = skip_ref[e]

    # -- ConvTranspose1d (kernel == stride == S): one dot for all S taps over the
    #    stride-S repeated x slab; per-column phase selection + padding zeros come
    #    from the precomputed 0/1 phase masks (no scatter matmuls).
    cand = jnp.dot(wt_ref[...], xes_ref[...], preferred_element_type=jnp.float32)
    bt = bt_ref[...]
    xup = jnp.where(pmask_ref[0] != 0.0, cand[:C_out, :] + bt, 0.0)
    for q in range(1, S):
        xup = xup + jnp.where(pmask_ref[q] != 0.0,
                              cand[q * C_out:(q + 1) * C_out, :] + bt, 0.0)

    # -- Conv1d #1 over concat([x_up, skip], channels): im2col stack (K static slice
    #    copies) then ONE matmul; BN (eval, bias folded) + ReLU; Dropout = identity.
    for k in range(K):
        r = 2 * C_out * k
        im1_ref[r: r + C_out, :] = xup[:, k: k + W_c1]
        im1_ref[r + C_out: r + 2 * C_out, :] = jnp.where(
            smask_ref[:, k: k + W_c1] != 0.0, sks_ref[:, k: k + W_c1], 0.0)
    acc1 = jnp.dot(w1_ref[...], im1_ref[...], preferred_element_type=jnp.float32)
    h1 = jnp.maximum(acc1 * sc1_ref[...] + sh1_ref[...], 0.0)

    # -- Conv1d #2 + BN + ReLU, reading h1 through a lane-shifted slab so each
    #    element's zero padding is again just a masked read.
    h1s_ref[:, P: P + W_c1] = h1
    for k in range(K):
        im2_ref[C_out * k: C_out * (k + 1), :] = jnp.where(
            hmask_ref[:, k: k + W_c2] != 0.0, h1s_ref[:, k: k + W_c2], 0.0)
    acc2 = jnp.dot(w2_ref[...], im2_ref[...], preferred_element_type=jnp.float32)
    o_ref[0] = jnp.maximum(acc2 * sc2_ref[...] + sh2_ref[...], 0.0)


def _choose_batch_block(B, Es, target_width=512):
    """Largest divisor of B whose slab width stays bounded; prefer >=2 grid steps
    when possible so a v7x megacore can shard the (parallel) batch axis."""
    divisors = [d for d in range(1, B + 1) if B % d == 0]
    fitting = [d for d in divisors if d * Es <= max(target_width, Es)]
    tb = max(fitting)
    if tb == B and B > 1:
        tb = max(d for d in divisors if d <= B // 2)
    return tb


def upblock_forward(x, skip, params, *, kernel_size, padding, pool_size,
                    eps=1e-5, batch_block=None):
    B, C_in, L_in = x.shape
    Bs, C_out, L_skip = skip.shape
    assert Bs == B
    K, P, S = kernel_size, padding, pool_size

    L_up = L_in * S
    diff = L_skip - L_up
    if diff < 0:
        raise ValueError("skip length must be >= upsampled length (cropping via "
                         "negative F.pad is not supported by this kernel)")
    Lp = L_skip + 2 * P                       # per-element padded conv1 input width
    L_out1 = Lp - K + 1
    L_out2 = L_out1 + 2 * P - K + 1
    assert L_out1 >= 1 and L_out2 >= 1
    off_x = P + diff // 2                     # conv pad + left half of F.pad
    Es = max(Lp, L_out1 + P, L_out2)          # per-element stride inside the slabs

    TB = batch_block if batch_block is not None else _choose_batch_block(B, Es)
    assert B % TB == 0
    nb = B // TB
    W_in = TB * Es                            # input slab width
    W_c1 = W_in - K + 1                       # conv1 output slab width
    W_h = max(W_in, (TB - 1) * Es + L_out1 + 2 * P, W_c1 + P)   # h1 slab width
    W_c2 = W_h - K + 1                        # conv2 output slab width

    # ---- host-side constants: phase / data-column masks (pure 0/1 layout info) ----
    pmask = np.zeros((S, 1, W_in), np.float32)
    smask = np.zeros((1, W_in), np.float32)
    hmask = np.zeros((1, W_h), np.float32)
    for e in range(TB):
        b0 = e * Es
        smask[0, b0 + P: b0 + P + L_skip] = 1.0
        hmask[0, b0 + P: b0 + P + L_out1] = 1.0
        for t in range(L_up):
            pmask[t % S, 0, b0 + off_x + t] = 1.0
    pmask, smask, hmask = jnp.asarray(pmask), jnp.asarray(smask), jnp.asarray(hmask)

    # ---- weights / BN folding (eval mode) ----
    Wt, bt = params["up_w"], params["up_b"]
    cw1, cb1 = params["c1_w"], params["c1_b"]
    g1, be1, rm1, rv1 = params["bn1_g"], params["bn1_b"], params["bn1_rm"], params["bn1_rv"]
    cw2, cb2 = params["c2_w"], params["c2_b"]
    g2, be2, rm2, rv2 = params["bn2_g"], params["bn2_b"], params["bn2_rm"], params["bn2_rv"]

    wt_stack = jnp.transpose(Wt, (2, 1, 0)).reshape(S * C_out, C_in).astype(jnp.float32)
    bt_c = bt.reshape(C_out, 1).astype(jnp.float32)
    w1_im = jnp.transpose(cw1, (0, 2, 1)).reshape(C_out, K * 2 * C_out).astype(jnp.float32)
    w2_im = jnp.transpose(cw2, (0, 2, 1)).reshape(C_out, K * C_out).astype(jnp.float32)

    s1 = g1 / jnp.sqrt(rv1 + eps)
    s2 = g2 / jnp.sqrt(rv2 + eps)
    sc1 = s1.reshape(C_out, 1).astype(jnp.float32)
    sh1 = ((cb1 - rm1) * s1 + be1).reshape(C_out, 1).astype(jnp.float32)
    sc2 = s2.reshape(C_out, 1).astype(jnp.float32)
    sh2 = ((cb2 - rm2) * s2 + be2).reshape(C_out, 1).astype(jnp.float32)

    # Stride-S repeat of x along length: xe[:, :, p] == x[:, :, p // S].
    # Layout plumbing on the small encoder tensor; replaces the O(L^2) scatter matmuls.
    xe = jnp.repeat(x.astype(jnp.float32), S, axis=2)
    skip_f = skip.astype(jnp.float32)

    kernel = functools.partial(
        _upblock_kernel, TB=TB, S=S, K=K, P=P, Es=Es, C_out=C_out,
        L_up=L_up, L_skip=L_skip, off_x=off_x, W_c1=W_c1, W_c2=W_c2)

    def _full(a):
        n = a.ndim
        return pl.BlockSpec(a.shape, lambda g, _n=n: (0,) * _n)

    grid_spec = pltpu.PrefetchScalarGridSpec(
        num_scalar_prefetch=0,
        grid=(nb,),
        in_specs=[
            pl.BlockSpec((TB, C_in, L_up), lambda g: (g, 0, 0)),
            pl.BlockSpec((TB, C_out, L_skip), lambda g: (g, 0, 0)),
            _full(wt_stack), _full(bt_c),
            _full(pmask), _full(smask), _full(hmask),
            _full(w1_im), _full(sc1), _full(sh1),
            _full(w2_im), _full(sc2), _full(sh2),
        ],
        out_specs=pl.BlockSpec((1, C_out, W_c2), lambda g: (g, 0, 0)),
        scratch_shapes=[
            pltpu.VMEM((C_in, W_in), jnp.float32),            # repeated-x slab
            pltpu.VMEM((C_out, W_in), jnp.float32),           # skip slab
            pltpu.VMEM((C_out, W_h), jnp.float32),            # h1 slab (shifted by P)
            pltpu.VMEM((K * 2 * C_out, W_c1), jnp.float32),   # conv1 im2col stack
            pltpu.VMEM((K * C_out, W_c2), jnp.float32),       # conv2 im2col stack
        ],
    )
    out_slab = pl.pallas_call(
        kernel,
        out_shape=jax.ShapeDtypeStruct((nb, C_out, W_c2), jnp.float32),
        grid_spec=grid_spec,
        compiler_params=pltpu.CompilerParams(dimension_semantics=("parallel",)),
    )(xe, skip_f, wt_stack, bt_c, pmask, smask, hmask,
      w1_im, sc1, sh1, w2_im, sc2, sh2)

    # Wrapper-side layout plumbing: pull each element's valid columns out of the
    # lane-dense output slab and restore the (B, C_out, L_out2) layout.
    pieces = [out_slab[:, :, e * Es: e * Es + L_out2] for e in range(TB)]
    return jnp.stack(pieces, axis=1).reshape(B, C_out, L_out2)


def upblock_reference(x, skip, params, *, kernel_size, padding, pool_size, eps=1e-5):
    """Plain-JAX reference mirroring the PyTorch forward (eval mode)."""
    Wt, bt = params["up_w"], params["up_b"]
    W1, b1 = params["c1_w"], params["c1_b"]
    g1, be1, rm1, rv1 = params["bn1_g"], params["bn1_b"], params["bn1_rm"], params["bn1_rv"]
    W2, b2 = params["c2_w"], params["c2_b"]
    g2, be2, rm2, rv2 = params["bn2_g"], params["bn2_b"], params["bn2_rm"], params["bn2_rv"]

    B, C_in, L_in = x.shape
    _, C_out, L_skip = skip.shape
    S, K, P = pool_size, kernel_size, padding

    # ConvTranspose1d with kernel == stride == S
    y = jnp.einsum("bci,cok->boik", x, Wt) + bt[None, :, None, None]
    y = y.reshape(B, C_out, L_in * S)
    diff = L_skip - L_in * S
    y = jnp.pad(y, ((0, 0), (0, 0), (diff // 2, diff - diff // 2)))
    z = jnp.concatenate([y, skip], axis=1)

    def conv1d(z, W, b):
        L = z.shape[-1]
        Lout = L + 2 * P - K + 1
        zp = jnp.pad(z, ((0, 0), (0, 0), (P, P)))
        out = jnp.zeros((z.shape[0], W.shape[0], Lout), jnp.float32)
        for k in range(K):
            out = out + jnp.einsum("oc,bcl->bol", W[:, :, k], zp[:, :, k:k + Lout])
        return out + b[None, :, None]

    def bn(h, g, be, rm, rv):
        return (h - rm[None, :, None]) / jnp.sqrt(rv + eps)[None, :, None] \
               * g[None, :, None] + be[None, :, None]

    h = jnp.maximum(bn(conv1d(z, W1, b1), g1, be1, rm1, rv1), 0.0)
    h = jnp.maximum(bn(conv1d(h, W2, b2), g2, be2, rm2, rv2), 0.0)
    return h


if __name__ == "__main__":
    in_channels, out_channels = 16, 8
    kernel_size, padding, pool_size, dropout = 3, 1, 2, 0.25
    B, L_in, L_skip = 4, 8, 18   # up(x): length 16 -> F.pad by diff=2 to 18

    key = jax.random.PRNGKey(0)
    keys = jax.random.split(key, 16)

    def nrm(k, shape, s=0.1):
        return (s * jax.random.normal(k, shape)).astype(jnp.float32)

    params = dict(
        up_w=nrm(keys[0], (in_channels, out_channels, pool_size)),
        up_b=nrm(keys[1], (out_channels,)),
        c1_w=nrm(keys[2], (out_channels, 2 * out_channels, kernel_size)),
        c1_b=nrm(keys[3], (out_channels,)),
        bn1_g=(1.0 + 0.1 * jax.random.normal(keys[4], (out_channels,))).astype(jnp.float32),
        bn1_b=nrm(keys[5], (out_channels,)),
        bn1_rm=nrm(keys[6], (out_channels,)),
        bn1_rv=(1.0 + 0.1 * jax.random.uniform(keys[7], (out_channels,))).astype(jnp.float32),
        c2_w=nrm(keys[8], (out_channels, out_channels, kernel_size)),
        c2_b=nrm(keys[9], (out_channels,)),
        bn2_g=(1.0 + 0.1 * jax.random.normal(keys[10], (out_channels,))).astype(jnp.float32),
        bn2_b=nrm(keys[11], (out_channels,)),
        bn2_rm=nrm(keys[12], (out_channels,)),
        bn2_rv=(1.0 + 0.1 * jax.random.uniform(keys[13], (out_channels,))).astype(jnp.float32),
    )

    x = jax.random.normal(keys[14], (B, in_channels, L_in), dtype=jnp.float32)
    skip = jax.random.normal(keys[15], (B, out_channels, L_skip), dtype=jnp.float32)

    out = upblock_forward(x, skip, params, kernel_size=kernel_size,
                          padding=padding, pool_size=pool_size)
    out = jax.block_until_ready(out)

    ref = upblock_reference(x, skip, params, kernel_size=kernel_size,
                            padding=padding, pool_size=pool_size)
    assert out.shape == (B, out_channels, L_skip), out.shape
    max_err = float(jnp.max(jnp.abs(out - ref)))
    assert jnp.allclose(out, ref, atol=2e-4, rtol=2e-4), f"max abs err = {max_err}"
    print("KERNEL_OK")
</pallas_src>

<mosaic_0001>
module attributes {stable_mosaic.version = 11 : i64} {
  func.func @_upblock_kernel(%arg0: i32, %arg1: memref<2x16x16xf32, #tpu.memory_space<vmem>>, %arg2: memref<2x8x18xf32, #tpu.memory_space<vmem>>, %arg3: memref<16x16xf32, #tpu.memory_space<vmem>>, %arg4: memref<8x1xf32, #tpu.memory_space<vmem>>, %arg5: memref<2x1x40xf32, #tpu.memory_space<vmem>>, %arg6: memref<1x40xf32, #tpu.memory_space<vmem>>, %arg7: memref<1x40xf32, #tpu.memory_space<vmem>>, %arg8: memref<8x48xf32, #tpu.memory_space<vmem>>, %arg9: memref<8x1xf32, #tpu.memory_space<vmem>>, %arg10: memref<8x1xf32, #tpu.memory_space<vmem>>, %arg11: memref<8x24xf32, #tpu.memory_space<vmem>>, %arg12: memref<8x1xf32, #tpu.memory_space<vmem>>, %arg13: memref<8x1xf32, #tpu.memory_space<vmem>>, %arg14: memref<1x8x38xf32, #tpu.memory_space<vmem>>, %arg15: memref<16x40xf32, #tpu.memory_space<vmem>>, %arg16: memref<8x40xf32, #tpu.memory_space<vmem>>, %arg17: memref<8x40xf32, #tpu.memory_space<vmem>>, %arg18: memref<48x38xf32, #tpu.memory_space<vmem>>, %arg19: memref<24x38xf32, #tpu.memory_space<vmem>>) attributes {dimension_semantics = [#tpu.dimension_semantics<parallel>], iteration_bounds = array<i64: 2>, scalar_prefetch = 0 : i64, scratch_operands = 5 : i64, tpu.core_type = #tpu.core_type<tc>, window_params = [{transform_indices = @transform_0, window_bounds = array<i64: 2, 16, 16>}, {transform_indices = @transform_1, window_bounds = array<i64: 2, 8, 18>}, {pipeline_mode = #tpu.pipeline_mode<synchronous>, transform_indices = @transform_2, window_bounds = array<i64: 16, 16>}, {pipeline_mode = #tpu.pipeline_mode<synchronous>, transform_indices = @transform_3, window_bounds = array<i64: 8, 1>}, {pipeline_mode = #tpu.pipeline_mode<synchronous>, transform_indices = @transform_4, window_bounds = array<i64: 2, 1, 40>}, {pipeline_mode = #tpu.pipeline_mode<synchronous>, transform_indices = @transform_5, window_bounds = array<i64: 1, 40>}, {pipeline_mode = #tpu.pipeline_mode<synchronous>, transform_indices = @transform_6, window_bounds = array<i64: 1, 40>}, {pipeline_mode = #tpu.pipeline_mode<synchronous>, transform_indices = @transform_7, window_bounds = array<i64: 8, 48>}, {pipeline_mode = #tpu.pipeline_mode<synchronous>, transform_indices = @transform_8, window_bounds = array<i64: 8, 1>}, {pipeline_mode = #tpu.pipeline_mode<synchronous>, transform_indices = @transform_9, window_bounds = array<i64: 8, 1>}, {pipeline_mode = #tpu.pipeline_mode<synchronous>, transform_indices = @transform_10, window_bounds = array<i64: 8, 24>}, {pipeline_mode = #tpu.pipeline_mode<synchronous>, transform_indices = @transform_11, window_bounds = array<i64: 8, 1>}, {pipeline_mode = #tpu.pipeline_mode<synchronous>, transform_indices = @transform_12, window_bounds = array<i64: 8, 1>}, {transform_indices = @transform_13, window_bounds = array<i64: 1, 8, 38>}]} {
    %c0 = arith.constant 0 : index
    %c0_0 = arith.constant 0 : index
    %c0_1 = arith.constant 0 : index
    %0 = vector.load %arg1[%c0, %c0_0, %c0_1] : memref<2x16x16xf32, #tpu.memory_space<vmem>>, vector<1x16x16xf32>
    %1 = vector.shape_cast %0 : vector<1x16x16xf32> to vector<16x16xf32>
    %c0_2 = arith.constant 0 : index
    %c2 = arith.constant 2 : index
    %2 = vector.load %arg15[%c0_2, %c2] : memref<16x40xf32, #tpu.memory_space<vmem>>, vector<16x16xf32>
    tpu.vector_store %arg15[%c0_2, %c2], %1 {strides = array<i32>} : memref<16x40xf32, #tpu.memory_space<vmem>>, vector<16x16xf32>,
    %c0_3 = arith.constant 0 : index
    %c0_4 = arith.constant 0 : index
    %c0_5 = arith.constant 0 : index
    %3 = vector.load %arg2[%c0_3, %c0_4, %c0_5] : memref<2x8x18xf32, #tpu.memory_space<vmem>>, vector<1x8x18xf32>
    %4 = vector.shape_cast %3 : vector<1x8x18xf32> to vector<8x18xf32>
    %c0_6 = arith.constant 0 : index
    %c1 = arith.constant 1 : index
    %5 = vector.load %arg16[%c0_6, %c1] : memref<8x40xf32, #tpu.memory_space<vmem>>, vector<8x18xf32>
    tpu.vector_store %arg16[%c0_6, %c1], %4 {strides = array<i32>} : memref<8x40xf32, #tpu.memory_space<vmem>>, vector<8x18xf32>,
    %c1_7 = arith.constant 1 : index
    %c0_8 = arith.constant 0 : index
    %c0_9 = arith.constant 0 : index
    %6 = vector.load %arg1[%c1_7, %c0_8, %c0_9] : memref<2x16x16xf32, #tpu.memory_space<vmem>>, vector<1x16x16xf32>
    %7 = vector.shape_cast %6 : vector<1x16x16xf32> to vector<16x16xf32>
    %c0_10 = arith.constant 0 : index
    %c22 = arith.constant 22 : index
    %8 = vector.load %arg15[%c0_10, %c22] : memref<16x40xf32, #tpu.memory_space<vmem>>, vector<16x16xf32>
    tpu.vector_store %arg15[%c0_10, %c22], %7 {strides = array<i32>} : memref<16x40xf32, #tpu.memory_space<vmem>>, vector<16x16xf32>,
    %c1_11 = arith.constant 1 : index
    %c0_12 = arith.constant 0 : index
    %c0_13 = arith.constant 0 : index
    %9 = vector.load %arg2[%c1_11, %c0_12, %c0_13] : memref<2x8x18xf32, #tpu.memory_space<vmem>>, vector<1x8x18xf32>
    %10 = vector.shape_cast %9 : vector<1x8x18xf32> to vector<8x18xf32>
    %c0_14 = arith.constant 0 : index
    %c21 = arith.constant 21 : index
    %11 = vector.load %arg16[%c0_14, %c21] : memref<8x40xf32, #tpu.memory_space<vmem>>, vector<8x18xf32>
    tpu.vector_store %arg16[%c0_14, %c21], %10 {strides = array<i32>} : memref<8x40xf32, #tpu.memory_space<vmem>>, vector<8x18xf32>,
    %c0_15 = arith.constant 0 : index
    %c0_16 = arith.constant 0 : index
    %12 = vector.load %arg3[%c0_15, %c0_16] : memref<16x16xf32, #tpu.memory_space<vmem>>, vector<16x16xf32>
    %c0_17 = arith.constant 0 : index
    %c0_18 = arith.constant 0 : index
    %13 = vector.load %arg15[%c0_17, %c0_18] : memref<16x40xf32, #tpu.memory_space<vmem>>, vector<16x40xf32>
    %cst = arith.constant dense<0.000000e+00> : vector<16x40xf32>
    %14 = tpu.matmul %12, %13, %cst {dimension_numbers = #tpu.dot_dimension_numbers<[1], [0], [0], [1], [0, 0, 1, 1], [], []>} : vector<16x16xf32>, vector<16x40xf32>, vector<16x40xf32> -> vector<16x40xf32>
    %c0_19 = arith.constant 0 : index
    %c0_20 = arith.constant 0 : index
    %15 = vector.load %arg4[%c0_19, %c0_20] : memref<8x1xf32, #tpu.memory_space<vmem>>, vector<8x1xf32>
    %c0_21 = arith.constant 0 : index
    %c0_22 = arith.constant 0 : index
    %c0_23 = arith.constant 0 : index
    %16 = vector.load %arg5[%c0_21, %c0_22, %c0_23] : memref<2x1x40xf32, #tpu.memory_space<vmem>>, vector<1x1x40xf32>
    %17 = vector.shape_cast %16 : vector<1x1x40xf32> to vector<1x40xf32>
    %cst_24 = arith.constant 0.000000e+00 : f32
    %18 = vector.broadcast %cst_24 : f32 to vector<1x40xf32>
    %19 = arith.cmpf one, %17, %18 : vector<1x40xf32>
    %20 = vector.extract_strided_slice %14 {offsets = [0, 0], sizes = [8, 40], strides = [1, 1]} : vector<16x40xf32> to vector<8x40xf32>
    %21 = vector.broadcast %15 : vector<8x1xf32> to vector<8x40xf32>
    %22 = arith.addf %20, %21 : vector<8x40xf32>
    %cst_25 = arith.constant 0.000000e+00 : f32
    %23 = vector.shape_cast %19 : vector<1x40xi1> to vector<1x40xi1>
    %24 = vector.broadcast %23 : vector<1x40xi1> to vector<8x40xi1>
    %25 = vector.broadcast %cst_25 : f32 to vector<8x40xf32>
    %26 = arith.select %24, %22, %25 : vector<8x40xi1>, vector<8x40xf32>
    %c1_26 = arith.constant 1 : index
    %c0_27 = arith.constant 0 : index
    %c0_28 = arith.constant 0 : index
    %27 = vector.load %arg5[%c1_26, %c0_27, %c0_28] : memref<2x1x40xf32, #tpu.memory_space<vmem>>, vector<1x1x40xf32>
    %28 = vector.shape_cast %27 : vector<1x1x40xf32> to vector<1x40xf32>
    %cst_29 = arith.constant 0.000000e+00 : f32
    %29 = vector.broadcast %cst_29 : f32 to vector<1x40xf32>
    %30 = arith.cmpf one, %28, %29 : vector<1x40xf32>
    %31 = vector.extract_strided_slice %14 {offsets = [8, 0], sizes = [8, 40], strides = [1, 1]} : vector<16x40xf32> to vector<8x40xf32>
    %32 = vector.broadcast %15 : vector<8x1xf32> to vector<8x40xf32>
    %33 = arith.addf %31, %32 : vector<8x40xf32>
    %cst_30 = arith.constant 0.000000e+00 : f32
    %34 = vector.shape_cast %30 : vector<1x40xi1> to vector<1x40xi1>
    %35 = vector.broadcast %34 : vector<1x40xi1> to vector<8x40xi1>
    %36 = vector.broadcast %cst_30 : f32 to vector<8x40xf32>
    %37 = arith.select %35, %33, %36 : vector<8x40xi1>, vector<8x40xf32>
    %38 = arith.addf %26, %37 : vector<8x40xf32>
    %39 = vector.extract_strided_slice %38 {offsets = [0, 0], sizes = [8, 38], strides = [1, 1]} : vector<8x40xf32> to vector<8x38xf32>
    %c0_31 = arith.constant 0 : index
    %c0_32 = arith.constant 0 : index
    %40 = vector.load %arg18[%c0_31, %c0_32] : memref<48x38xf32, #tpu.memory_space<vmem>>, vector<8x38xf32>
    tpu.vector_store %arg18[%c0_31, %c0_32], %39 {strides = array<i32>} : memref<48x38xf32, #tpu.memory_space<vmem>>, vector<8x38xf32>,
    %c0_33 = arith.constant 0 : index
    %c0_34 = arith.constant 0 : index
    %41 = vector.load %arg6[%c0_33, %c0_34] : memref<1x40xf32, #tpu.memory_space<vmem>>, vector<1x38xf32>
    %cst_35 = arith.constant 0.000000e+00 : f32
    %42 = vector.broadcast %cst_35 : f32 to vector<1x38xf32>
    %43 = arith.cmpf one, %41, %42 : vector<1x38xf32>
    %c0_36 = arith.constant 0 : index
    %c0_37 = arith.constant 0 : index
    %44 = vector.load %arg16[%c0_36, %c0_37] : memref<8x40xf32, #tpu.memory_space<vmem>>, vector<8x38xf32>
    %cst_38 = arith.constant 0.000000e+00 : f32
    %45 = vector.shape_cast %43 : vector<1x38xi1> to vector<1x38xi1>
    %46 = vector.broadcast %45 : vector<1x38xi1> to vector<8x38xi1>
    %47 = vector.broadcast %cst_38 : f32 to vector<8x38xf32>
    %48 = arith.select %46, %44, %47 : vector<8x38xi1>, vector<8x38xf32>
    %c8 = arith.constant 8 : index
    %c0_39 = arith.constant 0 : index
    %49 = vector.load %arg18[%c8, %c0_39] : memref<48x38xf32, #tpu.memory_space<vmem>>, vector<8x38xf32>
    tpu.vector_store %arg18[%c8, %c0_39], %48 {strides = array<i32>} : memref<48x38xf32, #tpu.memory_space<vmem>>, vector<8x38xf32>,
    %50 = vector.extract_strided_slice %38 {offsets = [0, 1], sizes = [8, 38], strides = [1, 1]} : vector<8x40xf32> to vector<8x38xf32>
    %c16 = arith.constant 16 : index
    %c0_40 = arith.constant 0 : index
    %51 = vector.load %arg18[%c16, %c0_40] : memref<48x38xf32, #tpu.memory_space<vmem>>, vector<8x38xf32>
    tpu.vector_store %arg18[%c16, %c0_40], %50 {strides = array<i32>} : memref<48x38xf32, #tpu.memory_space<vmem>>, vector<8x38xf32>,
    %c0_41 = arith.constant 0 : index
    %c1_42 = arith.constant 1 : index
    %52 = vector.load %arg6[%c0_41, %c1_42] : memref<1x40xf32, #tpu.memory_space<vmem>>, vector<1x38xf32>
    %cst_43 = arith.constant 0.000000e+00 : f32
    %53 = vector.broadcast %cst_43 : f32 to vector<1x38xf32>
    %54 = arith.cmpf one, %52, %53 : vector<1x38xf32>
    %c0_44 = arith.constant 0 : index
    %c1_45 = arith.constant 1 : index
    %55 = vector.load %arg16[%c0_44, %c1_45] : memref<8x40xf32, #tpu.memory_space<vmem>>, vector<8x38xf32>
    %cst_46 = arith.constant 0.000000e+00 : f32
    %56 = vector.shape_cast %54 : vector<1x38xi1> to vector<1x38xi1>
    %57 = vector.broadcast %56 : vector<1x38xi1> to vector<8x38xi1>
    %58 = vector.broadcast %cst_46 : f32 to vector<8x38xf32>
    %59 = arith.select %57, %55, %58 : vector<8x38xi1>, vector<8x38xf32>
    %c24 = arith.constant 24 : index
    %c0_47 = arith.constant 0 : index
    %60 = vector.load %arg18[%c24, %c0_47] : memref<48x38xf32, #tpu.memory_space<vmem>>, vector<8x38xf32>
    tpu.vector_store %arg18[%c24, %c0_47], %59 {strides = array<i32>} : memref<48x38xf32, #tpu.memory_space<vmem>>, vector<8x38xf32>,
    %61 = vector.extract_strided_slice %38 {offsets = [0, 2], sizes = [8, 38], strides = [1, 1]} : vector<8x40xf32> to vector<8x38xf32>
    %c32 = arith.constant 32 : index
    %c0_48 = arith.constant 0 : index
    %62 = vector.load %arg18[%c32, %c0_48] : memref<48x38xf32, #tpu.memory_space<vmem>>, vector<8x38xf32>
    tpu.vector_store %arg18[%c32, %c0_48], %61 {strides = array<i32>} : memref<48x38xf32, #tpu.memory_space<vmem>>, vector<8x38xf32>,
    %c0_49 = arith.constant 0 : index
    %c2_50 = arith.constant 2 : index
    %63 = vector.load %arg6[%c0_49, %c2_50] : memref<1x40xf32, #tpu.memory_space<vmem>>, vector<1x38xf32>
    %cst_51 = arith.constant 0.000000e+00 : f32
    %64 = vector.broadcast %cst_51 : f32 to vector<1x38xf32>
    %65 = arith.cmpf one, %63, %64 : vector<1x38xf32>
    %c0_52 = arith.constant 0 : index
    %c2_53 = arith.constant 2 : index
    %66 = vector.load %arg16[%c0_52, %c2_53] : memref<8x40xf32, #tpu.memory_space<vmem>>, vector<8x38xf32>
    %cst_54 = arith.constant 0.000000e+00 : f32
    %67 = vector.shape_cast %65 : vector<1x38xi1> to vector<1x38xi1>
    %68 = vector.broadcast %67 : vector<1x38xi1> to vector<8x38xi1>
    %69 = vector.broadcast %cst_54 : f32 to vector<8x38xf32>
    %70 = arith.select %68, %66, %69 : vector<8x38xi1>, vector<8x38xf32>
    %c40 = arith.constant 40 : index
    %c0_55 = arith.constant 0 : index
    %71 = vector.load %arg18[%c40, %c0_55] : memref<48x38xf32, #tpu.memory_space<vmem>>, vector<8x38xf32>
    tpu.vector_store %arg18[%c40, %c0_55], %70 {strides = array<i32>} : memref<48x38xf32, #tpu.memory_space<vmem>>, vector<8x38xf32>,
    %c0_56 = arith.constant 0 : index
    %c0_57 = arith.constant 0 : index
    %72 = vector.load %arg8[%c0_56, %c0_57] : memref<8x48xf32, #tpu.memory_space<vmem>>, vector<8x48xf32>
    %c0_58 = arith.constant 0 : index
    %c0_59 = arith.constant 0 : index
    %73 = vector.load %arg18[%c0_58, %c0_59] : memref<48x38xf32, #tpu.memory_space<vmem>>, vector<48x38xf32>
    %cst_60 = arith.constant dense<0.000000e+00> : vector<8x38xf32>
    %74 = tpu.matmul %72, %73, %cst_60 {dimension_numbers = #tpu.dot_dimension_numbers<[1], [0], [0], [1], [0, 0, 1, 1], [], []>} : vector<8x48xf32>, vector<48x38xf32>, vector<8x38xf32> -> vector<8x38xf32>
    %c0_61 = arith.constant 0 : index
    %c0_62 = arith.constant 0 : index
    %75 = vector.load %arg9[%c0_61, %c0_62] : memref<8x1xf32, #tpu.memory_space<vmem>>, vector<8x1xf32>
    %76 = vector.broadcast %75 : vector<8x1xf32> to vector<8x38xf32>
    %77 = arith.mulf %74, %76 : vector<8x38xf32>
    %c0_63 = arith.constant 0 : index
    %c0_64 = arith.constant 0 : index
    %78 = vector.load %arg10[%c0_63, %c0_64] : memref<8x1xf32, #tpu.memory_space<vmem>>, vector<8x1xf32>
    %79 = vector.broadcast %78 : vector<8x1xf32> to vector<8x38xf32>
    %80 = arith.addf %77, %79 : vector<8x38xf32>
    %cst_65 = arith.constant 0.000000e+00 : f32
    %81 = vector.broadcast %cst_65 : f32 to vector<8x38xf32>
    %82 = arith.maximumf %80, %81 : vector<8x38xf32>
    %c0_66 = arith.constant 0 : index
    %c1_67 = arith.constant 1 : index
    %83 = vector.load %arg17[%c0_66, %c1_67] : memref<8x40xf32, #tpu.memory_space<vmem>>, vector<8x38xf32>
    tpu.vector_store %arg17[%c0_66, %c1_67], %82 {strides = array<i32>} : memref<8x40xf32, #tpu.memory_space<vmem>>, vector<8x38xf32>,
    %c0_68 = arith.constant 0 : index
    %c0_69 = arith.constant 0 : index
    %84 = vector.load %arg7[%c0_68, %c0_69] : memref<1x40xf32, #tpu.memory_space<vmem>>, vector<1x38xf32>
    %cst_70 = arith.constant 0.000000e+00 : f32
    %85 = vector.broadcast %cst_70 : f32 to vector<1x38xf32>
    %86 = arith.cmpf one, %84, %85 : vector<1x38xf32>
    %c0_71 = arith.constant 0 : index
    %c0_72 = arith.constant 0 : index
    %87 = vector.load %arg17[%c0_71, %c0_72] : memref<8x40xf32, #tpu.memory_space<vmem>>, vector<8x38xf32>
    %cst_73 = arith.constant 0.000000e+00 : f32
    %88 = vector.shape_cast %86 : vector<1x38xi1> to vector<1x38xi1>
    %89 = vector.broadcast %88 : vector<1x38xi1> to vector<8x38xi1>
    %90 = vector.broadcast %cst_73 : f32 to vector<8x38xf32>
    %91 = arith.select %89, %87, %90 : vector<8x38xi1>, vector<8x38xf32>
    %c0_74 = arith.constant 0 : index
    %c0_75 = arith.constant 0 : index
    %92 = vector.load %arg19[%c0_74, %c0_75] : memref<24x38xf32, #tpu.memory_space<vmem>>, vector<8x38xf32>
    tpu.vector_store %arg19[%c0_74, %c0_75], %91 {strides = array<i32>} : memref<24x38xf32, #tpu.memory_space<vmem>>, vector<8x38xf32>,
    %c0_76 = arith.constant 0 : index
    %c1_77 = arith.constant 1 : index
    %93 = vector.load %arg7[%c0_76, %c1_77] : memref<1x40xf32, #tpu.memory_space<vmem>>, vector<1x38xf32>
    %cst_78 = arith.constant 0.000000e+00 : f32
    %94 = vector.broadcast %cst_78 : f32 to vector<1x38xf32>
    %95 = arith.cmpf one, %93, %94 : vector<1x38xf32>
    %c0_79 = arith.constant 0 : index
    %c1_80 = arith.constant 1 : index
    %96 = vector.load %arg17[%c0_79, %c1_80] : memref<8x40xf32, #tpu.memory_space<vmem>>, vector<8x38xf32>
    %cst_81 = arith.constant 0.000000e+00 : f32
    %97 = vector.shape_cast %95 : vector<1x38xi1> to vector<1x38xi1>
    %98 = vector.broadcast %97 : vector<1x38xi1> to vector<8x38xi1>
    %99 = vector.broadcast %cst_81 : f32 to vector<8x38xf32>
    %100 = arith.select %98, %96, %99 : vector<8x38xi1>, vector<8x38xf32>
    %c8_82 = arith.constant 8 : index
    %c0_83 = arith.constant 0 : index
    %101 = vector.load %arg19[%c8_82, %c0_83] : memref<24x38xf32, #tpu.memory_space<vmem>>, vector<8x38xf32>
    tpu.vector_store %arg19[%c8_82, %c0_83], %100 {strides = array<i32>} : memref<24x38xf32, #tpu.memory_space<vmem>>, vector<8x38xf32>,
    %c0_84 = arith.constant 0 : index
    %c2_85 = arith.constant 2 : index
    %102 = vector.load %arg7[%c0_84, %c2_85] : memref<1x40xf32, #tpu.memory_space<vmem>>, vector<1x38xf32>
    %cst_86 = arith.constant 0.000000e+00 : f32
    %103 = vector.broadcast %cst_86 : f32 to vector<1x38xf32>
    %104 = arith.cmpf one, %102, %103 : vector<1x38xf32>
    %c0_87 = arith.constant 0 : index
    %c2_88 = arith.constant 2 : index
    %105 = vector.load %arg17[%c0_87, %c2_88] : memref<8x40xf32, #tpu.memory_space<vmem>>, vector<8x38xf32>
    %cst_89 = arith.constant 0.000000e+00 : f32
    %106 = vector.shape_cast %104 : vector<1x38xi1> to vector<1x38xi1>
    %107 = vector.broadcast %106 : vector<1x38xi1> to vector<8x38xi1>
    %108 = vector.broadcast %cst_89 : f32 to vector<8x38xf32>
    %109 = arith.select %107, %105, %108 : vector<8x38xi1>, vector<8x38xf32>
    %c16_90 = arith.constant 16 : index
    %c0_91 = arith.constant 0 : index
    %110 = vector.load %arg19[%c16_90, %c0_91] : memref<24x38xf32, #tpu.memory_space<vmem>>, vector<8x38xf32>
    tpu.vector_store %arg19[%c16_90, %c0_91], %109 {strides = array<i32>} : memref<24x38xf32, #tpu.memory_space<vmem>>, vector<8x38xf32>,
    %c0_92 = arith.constant 0 : index
    %c0_93 = arith.constant 0 : index
    %111 = vector.load %arg11[%c0_92, %c0_93] : memref<8x24xf32, #tpu.memory_space<vmem>>, vector<8x24xf32>
    %c0_94 = arith.constant 0 : index
    %c0_95 = arith.constant 0 : index
    %112 = vector.load %arg19[%c0_94, %c0_95] : memref<24x38xf32, #tpu.memory_space<vmem>>, vector<24x38xf32>
    %cst_96 = arith.constant dense<0.000000e+00> : vector<8x38xf32>
    %113 = tpu.matmul %111, %112, %cst_96 {dimension_numbers = #tpu.dot_dimension_numbers<[1], [0], [0], [1], [0, 0, 1, 1], [], []>} : vector<8x24xf32>, vector<24x38xf32>, vector<8x38xf32> -> vector<8x38xf32>
    %c0_97 = arith.constant 0 : index
    %c0_98 = arith.constant 0 : index
    %114 = vector.load %arg12[%c0_97, %c0_98] : memref<8x1xf32, #tpu.memory_space<vmem>>, vector<8x1xf32>
    %115 = vector.broadcast %114 : vector<8x1xf32> to vector<8x38xf32>
    %116 = arith.mulf %113, %115 : vector<8x38xf32>
    %c0_99 = arith.constant 0 : index
    %c0_100 = arith.constant 0 : index
    %117 = vector.load %arg13[%c0_99, %c0_100] : memref<8x1xf32, #tpu.memory_space<vmem>>, vector<8x1xf32>
    %118 = vector.broadcast %117 : vector<8x1xf32> to vector<8x38xf32>
    %119 = arith.addf %116, %118 : vector<8x38xf32>
    %cst_101 = arith.constant 0.000000e+00 : f32
    %120 = vector.broadcast %cst_101 : f32 to vector<8x38xf32>
    %121 = arith.maximumf %119, %120 : vector<8x38xf32>
    %c0_102 = arith.constant 0 : index
    %c0_103 = arith.constant 0 : index
    %c0_104 = arith.constant 0 : index
    %122 = vector.load %arg14[%c0_102, %c0_103, %c0_104] : memref<1x8x38xf32, #tpu.memory_space<vmem>>, vector<1x8x38xf32>
    %123 = vector.shape_cast %122 : vector<1x8x38xf32> to vector<8x38xf32>
    %124 = vector.shape_cast %121 : vector<8x38xf32> to vector<1x8x38xf32>
    tpu.vector_store %arg14[%c0_102, %c0_103, %c0_104], %124 {strides = array<i32>} : memref<1x8x38xf32, #tpu.memory_space<vmem>>, vector<1x8x38xf32>,
    return
  }
  func.func @transform_0(%arg0: i32) -> (i32, i32, i32) {
    %c0_i32 = arith.constant 0 : i32
    %c0_i32_0 = arith.constant 0 : i32
    %c0_i32_1 = arith.constant 0 : i32
    return %arg0, %c0_i32, %c0_i32_0 : i32, i32, i32
  }
  func.func @transform_1(%arg0: i32) -> (i32, i32, i32) {
    %c0_i32 = arith.constant 0 : i32
    %c0_i32_0 = arith.constant 0 : i32
    %c0_i32_1 = arith.constant 0 : i32
    return %arg0, %c0_i32, %c0_i32_0 : i32, i32, i32
  }
  func.func @transform_2(%arg0: i32) -> (i32, i32) {
    %c0_i32 = arith.constant 0 : i32
    %c0_i32_0 = arith.constant 0 : i32
    %c0_i32_1 = arith.constant 0 : i32
    return %c0_i32, %c0_i32_0 : i32, i32
  }
  func.func @transform_3(%arg0: i32) -> (i32, i32) {
    %c0_i32 = arith.constant 0 : i32
    %c0_i32_0 = arith.constant 0 : i32
    %c0_i32_1 = arith.constant 0 : i32
    return %c0_i32, %c0_i32_0 : i32, i32
  }
  func.func @transform_4(%arg0: i32) -> (i32, i32, i32) {
    %c0_i32 = arith.constant 0 : i32
    %c0_i32_0 = arith.constant 0 : i32
    %c0_i32_1 = arith.constant 0 : i32
    %c0_i32_2 = arith.constant 0 : i32
    return %c0_i32, %c0_i32_0, %c0_i32_1 : i32, i32, i32
  }
  func.func @transform_5(%arg0: i32) -> (i32, i32) {
    %c0_i32 = arith.constant 0 : i32
    %c0_i32_0 = arith.constant 0 : i32
    %c0_i32_1 = arith.constant 0 : i32
    return %c0_i32, %c0_i32_0 : i32, i32
  }
  func.func @transform_6(%arg0: i32) -> (i32, i32) {
    %c0_i32 = arith.constant 0 : i32
    %c0_i32_0 = arith.constant 0 : i32
    %c0_i32_1 = arith.constant 0 : i32
    return %c0_i32, %c0_i32_0 : i32, i32
  }
  func.func @transform_7(%arg0: i32) -> (i32, i32) {
    %c0_i32 = arith.constant 0 : i32
    %c0_i32_0 = arith.constant 0 : i32
    %c0_i32_1 = arith.constant 0 : i32
    return %c0_i32, %c0_i32_0 : i32, i32
  }
  func.func @transform_8(%arg0: i32) -> (i32, i32) {
    %c0_i32 = arith.constant 0 : i32
    %c0_i32_0 = arith.constant 0 : i32
    %c0_i32_1 = arith.constant 0 : i32
    return %c0_i32, %c0_i32_0 : i32, i32
  }
  func.func @transform_9(%arg0: i32) -> (i32, i32) {
    %c0_i32 = arith.constant 0 : i32
    %c0_i32_0 = arith.constant 0 : i32
    %c0_i32_1 = arith.constant 0 : i32
    return %c0_i32, %c0_i32_0 : i32, i32
  }
  func.func @transform_10(%arg0: i32) -> (i32, i32) {
    %c0_i32 = arith.constant 0 : i32
    %c0_i32_0 = arith.constant 0 : i32
    %c0_i32_1 = arith.constant 0 : i32
    return %c0_i32, %c0_i32_0 : i32, i32
  }
  func.func @transform_11(%arg0: i32) -> (i32, i32) {
    %c0_i32 = arith.constant 0 : i32
    %c0_i32_0 = arith.constant 0 : i32
    %c0_i32_1 = arith.constant 0 : i32
    return %c0_i32, %c0_i32_0 : i32, i32
  }
  func.func @transform_12(%arg0: i32) -> (i32, i32) {
    %c0_i32 = arith.constant 0 : i32
    %c0_i32_0 = arith.constant 0 : i32
    %c0_i32_1 = arith.constant 0 : i32
    return %c0_i32, %c0_i32_0 : i32, i32
  }
  func.func @transform_13(%arg0: i32) -> (i32, i32, i32) {
    %c0_i32 = arith.constant 0 : i32
    %c0_i32_0 = arith.constant 0 : i32
    %c0_i32_1 = arith.constant 0 : i32
    return %arg0, %c0_i32, %c0_i32_0 : i32, i32, i32
  }
}

</mosaic_0001>

<llo_original>
// kernel: tpu_custom_call.1
$region0: #{tpu_custom_call.1}
  #allocation0 [shape = 'u32[]', space=smem, size = 0x4, offset = 0x4, fixed_abs, tag = 'smem constant byte address 0x4 - core index']
  #allocation1 [shape = 'u32[144,128]{1,0:T(1,128)}', space=vmem, size = 0x12000, scoped, tag = 'internal scratch']
  #allocation2 [shape = 'f32[16,40]{1,0:T(8,128)}', space=vmem, size = 0x2000, scoped, tag = 'scratch operand']
  #allocation3 [shape = 'f32[8,40]{1,0:T(8,128)}', space=vmem, size = 0x1000, scoped, tag = 'scratch operand']
  #allocation4 [shape = 'f32[8,40]{1,0:T(8,128)}', space=vmem, size = 0x1000, scoped, tag = 'scratch operand']
  #allocation5 [shape = 'f32[48,38]{1,0:T(8,128)}', space=vmem, size = 0x6000, scoped, tag = 'scratch operand']
  #allocation6 [shape = 'f32[24,38]{1,0:T(8,128)}', space=vmem, size = 0x3000, scoped, tag = 'scratch operand']
  %s0 = inlined_call_operand.hbm [shape: f32[4,16,16], index: 0, kind: input, shape index: {}]
  %s1 = inlined_call_operand.vmem [shape: f32[4,8,18], index: 1, kind: input, shape index: {}]
  %s2 = inlined_call_operand.vmem [shape: f32[16,16], index: 2, kind: input, shape index: {}]
  %s3 = inlined_call_operand.vmem [shape: f32[8,1], index: 3, kind: input, shape index: {}]
  %s4 = inlined_call_operand.vmem [shape: f32[2,1,40], index: 4, kind: input, shape index: {}]
  %s5 = inlined_call_operand.vmem [shape: f32[1,40], index: 5, kind: input, shape index: {}]
  %s6 = inlined_call_operand.hbm [shape: f32[1,40], index: 6, kind: input, shape index: {}]
  %s7 = inlined_call_operand.vmem [shape: f32[8,48], index: 7, kind: input, shape index: {}]
  %s8 = inlined_call_operand.vmem [shape: f32[8,1], index: 8, kind: input, shape index: {}]
  %s9 = inlined_call_operand.vmem [shape: f32[8,1], index: 9, kind: input, shape index: {}]
  %s10 = inlined_call_operand.vmem [shape: f32[8,24], index: 10, kind: input, shape index: {}]
  %s11 = inlined_call_operand.vmem [shape: f32[8,1], index: 11, kind: input, shape index: {}]
  %s12 = inlined_call_operand.vmem [shape: f32[8,1], index: 12, kind: input, shape index: {}]
  %s13 = inlined_call_operand.hbm [shape: f32[2,8,38], index: 13, kind: output, shape index: {}]
  %s14 = sld [smem:[#allocation0]]
  $region93: #{tpu_custom_call.1} parent=0
    _
  %s16 = ssub.s32 1, %s14
  %s17 = scalar_select 0, %s16, %s14
  $region1: #{tpu_custom_call.1} parent=0
    #allocation7 [shape = 'u8[32768]{0}', space=vmem, size = 0x8000, scoped, tag = 'input window, operand 0']
    #allocation8 [shape = 's32[2]{0}', space=sflag, size = 0x8, scoped, tag = 'scoped memory for tpu_custom_call.1']
    #allocation9 [shape = 's32[2]{0}', space=sflag, size = 0x8, scoped, tag = 'scoped memory for tpu_custom_call.1']
    #allocation10 [shape = 'u8[512]{0}', space=vmem, size = 0x400, scoped, tag = 'input window, operand 6, single buffered']
    #allocation11 [shape = 's32[1]{0}', space=sflag, size = 0x4, scoped, tag = 'scoped memory for tpu_custom_call.1']
    #allocation12 [shape = 'u8[8192]{0}', space=vmem, size = 0x2000, scoped, tag = 'output window, operand 0']
    %18 = vsyncpa [#allocation8], 0
    %s19 = scalar_lea.sflag [#allocation8], 1
    %20 = vsyncpa %s19, 0
    %21 = vsyncpa [#allocation11], 0
    %22 = vsyncpa [#allocation9], 0
    %s23 = scalar_lea.sflag [#allocation9], 1
    %24 = vsyncpa %s23, 0
    loop: start=0, step=1, limit=4
    $region2: #{tpu_custom_call.1} parent=1 // loop_pre_header
      _
    $region3: #{tpu_custom_call.1} parent=1 // loop_header
      %s26 = sphi 0, %s30
      %p27 = scmp.ge.s32.totalorder %s26, 4
      %s36 = sphi 0, %s38
      %s39 = sphi 0, %s36
      %s40 = sphi 0, %s39
      %s56 = sphi 0, %s40
      %s62 = sphi 0, %s64
      %s65 = sphi 0, %s62
      %s66 = sphi 0, %s65
      %s82 = sphi 0, %s66
      %s86 = sphi 0, %s86
      %s88 = sphi 0, %s86
      %s89 = sphi 0, %s88
      %s103 = sphi 0, %s89
      %s107 = sphi 0, %s107
      %s109 = sphi 0, %s107
      %s110 = sphi 0, %s109
      %s124 = sphi 0, %s110
      %s128 = sphi 0, %s128
      %s130 = sphi 0, %s128
      %s131 = sphi 0, %s130
      %s145 = sphi 0, %s131
      %s149 = sphi 0, %s149
      %s151 = sphi 0, %s149
      %s152 = sphi 0, %s151
      %s166 = sphi 0, %s152
      %s170 = sphi 0, %s170
      %s172 = sphi 0, %s170
      %s173 = sphi 0, %s172
      %s187 = sphi 0, %s173
      %s191 = sphi 0, %s191
      %s193 = sphi 0, %s191
      %s194 = sphi 0, %s193
      %s208 = sphi 0, %s194
      %s212 = sphi 0, %s212
      %s214 = sphi 0, %s212
      %s215 = sphi 0, %s214
      %s229 = sphi 0, %s215
      %s233 = sphi 0, %s233
      %s235 = sphi 0, %s233
      %s236 = sphi 0, %s235
      %s250 = sphi 0, %s236
      %s254 = sphi 0, %s254
      %s256 = sphi 0, %s254
      %s257 = sphi 0, %s256
      %s271 = sphi 0, %s257
      %s275 = sphi 0, %s275
      %s277 = sphi 0, %s275
      %s278 = sphi 0, %s277
      %s292 = sphi 0, %s278
      %s296 = sphi 0, %s296
      %s298 = sphi 0, %s296
      %s299 = sphi 0, %s298
      %s313 = sphi 0, %s299
      %s319 = sphi 0, %s321
      %s322 = sphi 0, %s319
      %s323 = sphi 0, %s322
      %s339 = sphi 0, %s323
    $region4: #{tpu_custom_call.1} parent=1 // loop_header_branch
      %29 = sbr.rel (%p27) target = $region8
    $region5: #{tpu_custom_call.1} parent=1 // loop_body
      %s31 = ssub.s32 %s26, 1
      %s32 = ssub.s32 %s26, 2
      %s33 = sadd.s32 %s26, 1
      %s34 = ssub.s32 %s26, %s33
      %p35 = scmp.eq.s32.totalorder %s34, 0
      %s37 = sadd.s32 %s36, 1
      %s38 = scalar_select %p35, %s36, %s37
      %p41 = pneg %p35
      %p42 = scmp.eq.s32.totalorder %s26, 1
      %p43 = por %p41, %p42
      %p44 = scmp.ne.s32.totalorder %s36, %s39
      %p45 = scmp.eq.s32.totalorder %s26, 0
      %p46 = por %p44, %p45
      %p47 = scmp.ne.s32.totalorder %s36, %s39
      %p48 = scmp.eq.s32.totalorder %s31, 1
      %p49 = por %p47, %p48
      %p50 = scmp.ne.s32.totalorder %s39, %s40
      %p51 = scmp.eq.s32.totalorder %s31, 0
      %p52 = por %p50, %p51
      %p53 = scmp.ne.s32.totalorder %s39, %s40
      %p54 = scmp.eq.s32.totalorder %s32, 1
      %p55 = por %p53, %p54
      %p57 = scmp.ne.s32.totalorder %s40, %s56
      %p58 = scmp.eq.s32.totalorder %s32, 0
      %p59 = por %p57, %p58
      %s60 = ssub.s32 %s26, %s33
      %p61 = scmp.eq.s32.totalorder %s60, 0
      %s63 = sadd.s32 %s62, 1
      %s64 = scalar_select %p61, %s62, %s63
      %p67 = pneg %p61
      %p68 = scmp.eq.s32.totalorder %s26, 1
      %p69 = por %p67, %p68
      %p70 = scmp.ne.s32.totalorder %s62, %s65
      %p71 = scmp.eq.s32.totalorder %s26, 0
      %p72 = por %p70, %p71
      %p73 = scmp.ne.s32.totalorder %s62, %s65
      %p74 = scmp.eq.s32.totalorder %s31, 1
      %p75 = por %p73, %p74
      %p76 = scmp.ne.s32.totalorder %s65, %s66
      %p77 = scmp.eq.s32.totalorder %s31, 0
      %p78 = por %p76, %p77
      %p79 = scmp.ne.s32.totalorder %s65, %s66
      %p80 = scmp.eq.s32.totalorder %s32, 1
      %p81 = por %p79, %p80
      %p83 = scmp.ne.s32.totalorder %s66, %s82
      %p84 = scmp.eq.s32.totalorder %s32, 0
      %p85 = por %p83, %p84
      %s87 = sadd.s32 %s86, 1
      %p90 = scmp.eq.s32.totalorder %s26, 1
      %p91 = scmp.ne.s32.totalorder %s86, %s88
      %p92 = scmp.eq.s32.totalorder %s26, 0
      %p93 = por %p91, %p92
      %p94 = scmp.ne.s32.totalorder %s86, %s88
      %p95 = scmp.eq.s32.totalorder %s31, 1
      %p96 = por %p94, %p95
      %p97 = scmp.ne.s32.totalorder %s88, %s89
      %p98 = scmp.eq.s32.totalorder %s31, 0
      %p99 = por %p97, %p98
      %p100 = scmp.ne.s32.totalorder %s88, %s89
      %p101 = scmp.eq.s32.totalorder %s32, 1
      %p102 = por %p100, %p101
      %p104 = scmp.ne.s32.totalorder %s89, %s103
      %p105 = scmp.eq.s32.totalorder %s32, 0
      %p106 = por %p104, %p105
      %s108 = sadd.s32 %s107, 1
      %p111 = scmp.eq.s32.totalorder %s26, 1
      %p112 = scmp.ne.s32.totalorder %s107, %s109
      %p113 = scmp.eq.s32.totalorder %s26, 0
      %p114 = por %p112, %p113
      %p115 = scmp.ne.s32.totalorder %s107, %s109
      %p116 = scmp.eq.s32.totalorder %s31, 1
      %p117 = por %p115, %p116
      %p118 = scmp.ne.s32.totalorder %s109, %s110
      %p119 = scmp.eq.s32.totalorder %s31, 0
      %p120 = por %p118, %p119
      %p121 = scmp.ne.s32.totalorder %s109, %s110
      %p122 = scmp.eq.s32.totalorder %s32, 1
      %p123 = por %p121, %p122
      %p125 = scmp.ne.s32.totalorder %s110, %s124
      %p126 = scmp.eq.s32.totalorder %s32, 0
      %p127 = por %p125, %p126
      %s129 = sadd.s32 %s128, 1
      %p132 = scmp.eq.s32.totalorder %s26, 1
      %p133 = scmp.ne.s32.totalorder %s128, %s130
      %p134 = scmp.eq.s32.totalorder %s26, 0
      %p135 = por %p133, %p134
      %p136 = scmp.ne.s32.totalorder %s128, %s130
      %p137 = scmp.eq.s32.totalorder %s31, 1
      %p138 = por %p136, %p137
      %p139 = scmp.ne.s32.totalorder %s130, %s131
      %p140 = scmp.eq.s32.totalorder %s31, 0
      %p141 = por %p139, %p140
      %p142 = scmp.ne.s32.totalorder %s130, %s131
      %p143 = scmp.eq.s32.totalorder %s32, 1
      %p144 = por %p142, %p143
      %p146 = scmp.ne.s32.totalorder %s131, %s145
      %p147 = scmp.eq.s32.totalorder %s32, 0
      %p148 = por %p146, %p147
      %s150 = sadd.s32 %s149, 1
      %p153 = scmp.eq.s32.totalorder %s26, 1
      %p154 = scmp.ne.s32.totalorder %s149, %s151
      %p155 = scmp.eq.s32.totalorder %s26, 0
      %p156 = por %p154, %p155
      %p157 = scmp.ne.s32.totalorder %s149, %s151
      %p158 = scmp.eq.s32.totalorder %s31, 1
      %p159 = por %p157, %p158
      %p160 = scmp.ne.s32.totalorder %s151, %s152
      %p161 = scmp.eq.s32.totalorder %s31, 0
      %p162 = por %p160, %p161
      %p163 = scmp.ne.s32.totalorder %s151, %s152
      %p164 = scmp.eq.s32.totalorder %s32, 1
      %p165 = por %p163, %p164
      %p167 = scmp.ne.s32.totalorder %s152, %s166
      %p168 = scmp.eq.s32.totalorder %s32, 0
      %p169 = por %p167, %p168
      %s171 = sadd.s32 %s170, 1
      %p174 = scmp.eq.s32.totalorder %s26, 1
      %p175 = scmp.ne.s32.totalorder %s170, %s172
      %p176 = scmp.eq.s32.totalorder %s26, 0
      %p177 = por %p175, %p176
      %p178 = scmp.ne.s32.totalorder %s170, %s172
      %p179 = scmp.eq.s32.totalorder %s31, 1
      %p180 = por %p178, %p179
      %p181 = scmp.ne.s32.totalorder %s172, %s173
      %p182 = scmp.eq.s32.totalorder %s31, 0
      %p183 = por %p181, %p182
      %p184 = scmp.ne.s32.totalorder %s172, %s173
      %p185 = scmp.eq.s32.totalorder %s32, 1
      %p186 = por %p184, %p185
      %p188 = scmp.ne.s32.totalorder %s173, %s187
      %p189 = scmp.eq.s32.totalorder %s32, 0
      %p190 = por %p188, %p189
      %s192 = sadd.s32 %s191, 1
      %p195 = scmp.eq.s32.totalorder %s26, 1
      %p196 = scmp.ne.s32.totalorder %s191, %s193
      %p197 = scmp.eq.s32.totalorder %s26, 0
      %p198 = por %p196, %p197
      %p199 = scmp.ne.s32.totalorder %s191, %s193
      %p200 = scmp.eq.s32.totalorder %s31, 1
      %p201 = por %p199, %p200
      %p202 = scmp.ne.s32.totalorder %s193, %s194
      %p203 = scmp.eq.s32.totalorder %s31, 0
      %p204 = por %p202, %p203
      %p205 = scmp.ne.s32.totalorder %s193, %s194
      %p206 = scmp.eq.s32.totalorder %s32, 1
      %p207 = por %p205, %p206
      %p209 = scmp.ne.s32.totalorder %s194, %s208
      %p210 = scmp.eq.s32.totalorder %s32, 0
      %p211 = por %p209, %p210
      %s213 = sadd.s32 %s212, 1
      %p216 = scmp.eq.s32.totalorder %s26, 1
      %p217 = scmp.ne.s32.totalorder %s212, %s214
      %p218 = scmp.eq.s32.totalorder %s26, 0
      %p219 = por %p217, %p218
      %p220 = scmp.ne.s32.totalorder %s212, %s214
      %p221 = scmp.eq.s32.totalorder %s31, 1
      %p222 = por %p220, %p221
      %p223 = scmp.ne.s32.totalorder %s214, %s215
      %p224 = scmp.eq.s32.totalorder %s31, 0
      %p225 = por %p223, %p224
      %p226 = scmp.ne.s32.totalorder %s214, %s215
      %p227 = scmp.eq.s32.totalorder %s32, 1
      %p228 = por %p226, %p227
      %p230 = scmp.ne.s32.totalorder %s215, %s229
      %p231 = scmp.eq.s32.totalorder %s32, 0
      %p232 = por %p230, %p231
      %s234 = sadd.s32 %s233, 1
      %p237 = scmp.eq.s32.totalorder %s26, 1
      %p238 = scmp.ne.s32.totalorder %s233, %s235
      %p239 = scmp.eq.s32.totalorder %s26, 0
      %p240 = por %p238, %p239
      %p241 = scmp.ne.s32.totalorder %s233, %s235
      %p242 = scmp.eq.s32.totalorder %s31, 1
      %p243 = por %p241, %p242
      %p244 = scmp.ne.s32.totalorder %s235, %s236
      %p245 = scmp.eq.s32.totalorder %s31, 0
      %p246 = por %p244, %p245
      %p247 = scmp.ne.s32.totalorder %s235, %s236
      %p248 = scmp.eq.s32.totalorder %s32, 1
      %p249 = por %p247, %p248
      %p251 = scmp.ne.s32.totalorder %s236, %s250
      %p252 = scmp.eq.s32.totalorder %s32, 0
      %p253 = por %p251, %p252
      %s255 = sadd.s32 %s254, 1
      %p258 = scmp.eq.s32.totalorder %s26, 1
      %p259 = scmp.ne.s32.totalorder %s254, %s256
      %p260 = scmp.eq.s32.totalorder %s26, 0
      %p261 = por %p259, %p260
      %p262 = scmp.ne.s32.totalorder %s254, %s256
      %p263 = scmp.eq.s32.totalorder %s31, 1
      %p264 = por %p262, %p263
      %p265 = scmp.ne.s32.totalorder %s256, %s257
      %p266 = scmp.eq.s32.totalorder %s31, 0
      %p267 = por %p265, %p266
      %p268 = scmp.ne.s32.totalorder %s256, %s257
      %p269 = scmp.eq.s32.totalorder %s32, 1
      %p270 = por %p268, %p269
      %p272 = scmp.ne.s32.totalorder %s257, %s271
      %p273 = scmp.eq.s32.totalorder %s32, 0
      %p274 = por %p272, %p273
      %s276 = sadd.s32 %s275, 1
      %p279 = scmp.eq.s32.totalorder %s26, 1
      %p280 = scmp.ne.s32.totalorder %s275, %s277
      %p281 = scmp.eq.s32.totalorder %s26, 0
      %p282 = por %p280, %p281
      %p283 = scmp.ne.s32.totalorder %s275, %s277
      %p284 = scmp.eq.s32.totalorder %s31, 1
      %p285 = por %p283, %p284
      %p286 = scmp.ne.s32.totalorder %s277, %s278
      %p287 = scmp.eq.s32.totalorder %s31, 0
      %p288 = por %p286, %p287
      %p289 = scmp.ne.s32.totalorder %s277, %s278
      %p290 = scmp.eq.s32.totalorder %s32, 1
      %p291 = por %p289, %p290
      %p293 = scmp.ne.s32.totalorder %s278, %s292
      %p294 = scmp.eq.s32.totalorder %s32, 0
      %p295 = por %p293, %p294
      %s297 = sadd.s32 %s296, 1
      %p300 = scmp.eq.s32.totalorder %s26, 1
      %p301 = scmp.ne.s32.totalorder %s296, %s298
      %p302 = scmp.eq.s32.totalorder %s26, 0
      %p303 = por %p301, %p302
      %p304 = scmp.ne.s32.totalorder %s296, %s298
      %p305 = scmp.eq.s32.totalorder %s31, 1
      %p306 = por %p304, %p305
      %p307 = scmp.ne.s32.totalorder %s298, %s299
      %p308 = scmp.eq.s32.totalorder %s31, 0
      %p309 = por %p307, %p308
      %p310 = scmp.ne.s32.totalorder %s298, %s299
      %p311 = scmp.eq.s32.totalorder %s32, 1
      %p312 = por %p310, %p311
      %p314 = scmp.ne.s32.totalorder %s299, %s313
      %p315 = scmp.eq.s32.totalorder %s32, 0
      %p316 = por %p314, %p315
      %s317 = ssub.s32 %s26, %s33
      %p318 = scmp.eq.s32.totalorder %s317, 0
      %s320 = sadd.s32 %s319, 1
      %s321 = scalar_select %p318, %s319, %s320
      %p324 = pneg %p318
      %p325 = scmp.eq.s32.totalorder %s26, 1
      %p326 = por %p324, %p325
      %p327 = scmp.ne.s32.totalorder %s319, %s322
      %p328 = scmp.eq.s32.totalorder %s26, 0
      %p329 = por %p327, %p328
      %p330 = scmp.ne.s32.totalorder %s319, %s322
      %p331 = scmp.eq.s32.totalorder %s31, 1
      %p332 = por %p330, %p331
      %p333 = scmp.ne.s32.totalorder %s322, %s323
      %p334 = scmp.eq.s32.totalorder %s31, 0
      %p335 = por %p333, %p334
      %p336 = scmp.ne.s32.totalorder %s322, %s323
      %p337 = scmp.eq.s32.totalorder %s32, 1
      %p338 = por %p336, %p337
      %p340 = scmp.ne.s32.totalorder %s323, %s339
      %p341 = scmp.eq.s32.totalorder %s32, 0
      %p342 = por %p340, %p341
      %p343 = scmp.le.s32.totalorder 1, %s26
      %p344 = scmp.lt.s32.totalorder %s26, 3
      %p345 = pnand %p343, %p344
      %p346 = pneg %p345
      // Predicated region
      $region9: #{tpu_custom_call.1} parent=5 // pred_check
        _
      $region10: #{tpu_custom_call.1} parent=5 // pred_check_branch
        %348 = sbr.rel (%p345) target = $region12
      $region11: #{tpu_custom_call.1} parent=5 // pred_region
        %s349 = ssub.s32 %s26, 1
        // Predicated region
        $region13: #{tpu_custom_call.1} parent=11 // pred_check
          %p350 = pneg %p99
        $region14: #{tpu_custom_call.1} parent=11 // pred_check_branch
          %352 = sbr.rel (%p350) target = $region16
        $region15: #{tpu_custom_call.1} parent=11 // pred_region
          _
        $region16: #{tpu_custom_call.1} parent=11 // pred_fallthru
          _
        // Predicated region
        $region17: #{tpu_custom_call.1} parent=11 // pred_check
          %p353 = pneg %p120
        $region18: #{tpu_custom_call.1} parent=11 // pred_check_branch
          %355 = sbr.rel (%p353) target = $region20
        $region19: #{tpu_custom_call.1} parent=11 // pred_region
          _
        $region20: #{tpu_custom_call.1} parent=11 // pred_fallthru
          _
        // Predicated region
        $region21: #{tpu_custom_call.1} parent=11 // pred_check
          %p356 = pneg %p141
        $region22: #{tpu_custom_call.1} parent=11 // pred_check_branch
          %358 = sbr.rel (%p356) target = $region24
        $region23: #{tpu_custom_call.1} parent=11 // pred_region
          _
        $region24: #{tpu_custom_call.1} parent=11 // pred_fallthru
          _
        // Predicated region
        $region25: #{tpu_custom_call.1} parent=11 // pred_check
          %p359 = pneg %p162
        $region26: #{tpu_custom_call.1} parent=11 // pred_check_branch
          %361 = sbr.rel (%p359) target = $region28
        $region27: #{tpu_custom_call.1} parent=11 // pred_region
          _
        $region28: #{tpu_custom_call.1} parent=11 // pred_fallthru
          _
        // Predicated region
        $region29: #{tpu_custom_call.1} parent=11 // pred_check
          %p362 = pneg %p183
        $region30: #{tpu_custom_call.1} parent=11 // pred_check_branch
          %364 = sbr.rel (%p362) target = $region32
        $region31: #{tpu_custom_call.1} parent=11 // pred_region
          %s366 = ssub.s32 16, 16
          %367 = vsyncadd [#allocation11], %s366
          %s369 = sshll.u32 [#allocation10], 4
          %s370 = int_to_ptr.vmem [resolvable:$true] %s369
          %372 = dma.hbm_to_vmem [thread:$0]  %s6, 16, %s370, [#allocation11]
        $region32: #{tpu_custom_call.1} parent=11 // pred_fallthru
          _
        // Predicated region
        $region33: #{tpu_custom_call.1} parent=11 // pred_check
          %p373 = pneg %p204
        $region34: #{tpu_custom_call.1} parent=11 // pred_check_branch
          %375 = sbr.rel (%p373) target = $region36
        $region35: #{tpu_custom_call.1} parent=11 // pred_region
          _
        $region36: #{tpu_custom_call.1} parent=11 // pred_fallthru
          _
        // Predicated region
        $region37: #{tpu_custom_call.1} parent=11 // pred_check
          %p376 = pneg %p225
        $region38: #{tpu_custom_call.1} parent=11 // pred_check_branch
          %378 = sbr.rel (%p376) target = $region40
        $region39: #{tpu_custom_call.1} parent=11 // pred_region
          _
        $region40: #{tpu_custom_call.1} parent=11 // pred_fallthru
          _
        // Predicated region
        $region41: #{tpu_custom_call.1} parent=11 // pred_check
          %p379 = pneg %p246
        $region42: #{tpu_custom_call.1} parent=11 // pred_check_branch
          %381 = sbr.rel (%p379) target = $region44
        $region43: #{tpu_custom_call.1} parent=11 // pred_region
          _
        $region44: #{tpu_custom_call.1} parent=11 // pred_fallthru
          _
        // Predicated region
        $region45: #{tpu_custom_call.1} parent=11 // pred_check
          %p382 = pneg %p267
        $region46: #{tpu_custom_call.1} parent=11 // pred_check_branch
          %384 = sbr.rel (%p382) target = $region48
        $region47: #{tpu_custom_call.1} parent=11 // pred_region
          _
        $region48: #{tpu_custom_call.1} parent=11 // pred_fallthru
          _
        // Predicated region
        $region49: #{tpu_custom_call.1} parent=11 // pred_check
          %p385 = pneg %p288
        $region50: #{tpu_custom_call.1} parent=11 // pred_check_branch
          %387 = sbr.rel (%p385) target = $region52
        $region51: #{tpu_custom_call.1} parent=11 // pred_region
          _
        $region52: #{tpu_custom_call.1} parent=11 // pred_fallthru
          _
        // Predicated region
        $region53: #{tpu_custom_call.1} parent=11 // pred_check
          %p388 = pneg %p309
        $region54: #{tpu_custom_call.1} parent=11 // pred_check_branch
          %390 = sbr.rel (%p388) target = $region56
        $region55: #{tpu_custom_call.1} parent=11 // pred_region
          _
        $region56: #{tpu_custom_call.1} parent=11 // pred_fallthru
          _
      $region12: #{tpu_custom_call.1} parent=5 // pred_fallthru
        _
      %p391 = scmp.lt.s32.totalorder %s26, 2
      // Predicated region
      $region57: #{tpu_custom_call.1} parent=5 // pred_check
        %p392 = pneg %p391
      $region58: #{tpu_custom_call.1} parent=5 // pred_check_branch
        %394 = sbr.rel (%p392) target = $region60
      $region59: #{tpu_custom_call.1} parent=5 // pred_region
        // Predicated region
        $region61: #{tpu_custom_call.1} parent=59 // pred_check
          %p395 = pneg %p46
        $region62: #{tpu_custom_call.1} parent=59 // pred_check_branch
          %397 = sbr.rel (%p395) target = $region64
        $region63: #{tpu_custom_call.1} parent=59 // pred_region
          %s398 = sand.u32 %s36, 1
          %s399 = scalar_lea.sflag [#allocation8], %s398
          %s400 = sand.u32 %s36, 1
          %s401 = smul.addr %s400, 32
          %s402 = scalar_lea.vmem [#allocation7], %s401
          %s403 = smul.u32 2, %s26
          %s405 = ssub.s32 512, 512
          %406 = vsyncadd %s399, %s405
          %s407 = smul.addr %s403, 2
          %s408 = smul.addr %s407, 128
          %s409 = scalar_lea.hbm %s0, %s408
          %s410 = sshll.u32 %s402, 4
          %s411 = int_to_ptr.vmem [resolvable:$true] %s410
          %416 = dma.hbm_to_vmem [thread:$0]  %s409, 512, %s411, %s399, 128, 128, 8
        $region64: #{tpu_custom_call.1} parent=59 // pred_fallthru
          _
        // Predicated region
        $region65: #{tpu_custom_call.1} parent=59 // pred_check
          %p417 = pneg %p72
        $region66: #{tpu_custom_call.1} parent=59 // pred_check_branch
          %419 = sbr.rel (%p417) target = $region68
        $region67: #{tpu_custom_call.1} parent=59 // pred_region
          %s420 = smul.u32 2, %s26
          %p421 = scmp.lt.s32.totalorder %s420, 3
          %s422 = scalar_select %p421, %s420, 3
          %s423 = smul.addr %s422, 8
          %s424 = scalar_lea.vmem %s1, %s423
          %s425 = smul.u32 2, %s26
        $region68: #{tpu_custom_call.1} parent=59 // pred_fallthru
          _
      $region60: #{tpu_custom_call.1} parent=5 // pred_fallthru
        _
      %p426 = scmp.le.s32.totalorder 1, %s26
      %p427 = scmp.lt.s32.totalorder %s26, 3
      %p428 = pnand %p426, %p427
      %p429 = pneg %p428
      // Predicated region
      $region69: #{tpu_custom_call.1} parent=5 // pred_check
        _
      $region70: #{tpu_custom_call.1} parent=5 // pred_check_branch
        %431 = sbr.rel (%p428) target = $region72
      $region71: #{tpu_custom_call.1} parent=5 // pred_region
        %s432 = ssub.s32 %s26, 1
        %s433 = sand.u32 %s39, 1
        %s434 = scalar_lea.sflag [#allocation8], %s433
        %s435 = sand.u32 %s39, 1
        %s436 = smul.addr %s435, 32
        %s437 = scalar_lea.vmem [#allocation7], %s436
        // Predicated region
        $region73: #{tpu_custom_call.1} parent=71 // pred_check
          %p438 = pneg %p52
        $region74: #{tpu_custom_call.1} parent=71 // pred_check_branch
          %440 = sbr.rel (%p438) target = $region76
        $region75: #{tpu_custom_call.1} parent=71 // pred_region
          %441 = dma.done %s434, 512
        $region76: #{tpu_custom_call.1} parent=71 // pred_fallthru
          _
        // Predicated region
        $region77: #{tpu_custom_call.1} parent=71 // pred_check
          %p442 = pneg %p183
        $region78: #{tpu_custom_call.1} parent=71 // pred_check_branch
          %444 = sbr.rel (%p442) target = $region80
        $region79: #{tpu_custom_call.1} parent=71 // pred_region
          %445 = dma.done [#allocation11], 16
        $region80: #{tpu_custom_call.1} parent=71 // pred_fallthru
          _
        %s446 = sand.u32 %s39, 1
        %s447 = scalar_lea.sflag [#allocation8], %s446
        %s448 = sand.u32 %s39, 1
        %s449 = smul.addr %s448, 32
        %s450 = scalar_lea.vmem [#allocation7], %s449
        %p451 = pneg %p52
        %p452 = pneg %p49
        %s453 = smul.u32 2, %s31
        %p454 = scmp.lt.s32.totalorder %s453, 3
        %s455 = scalar_select %p454, %s453, 3
        %s456 = smul.addr %s455, 8
        %s457 = scalar_lea.vmem %s1, %s456
        %p458 = pneg %p78
        %p459 = pneg %p75
        %p460 = pneg %p99
        %p461 = pneg %p96
        %p462 = pneg %p120
        %p463 = pneg %p117
        %p464 = pneg %p141
        %p465 = pneg %p138
        %p466 = pneg %p162
        %p467 = pneg %p159
        %p468 = pneg %p183
        %p469 = pneg %p180
        %p470 = pneg %p204
        %p471 = pneg %p201
        %p472 = pneg %p225
        %p473 = pneg %p222
        %p474 = pneg %p246
        %p475 = pneg %p243
        %p476 = pneg %p267
        %p477 = pneg %p264
        %p478 = pneg %p288
        %p479 = pneg %p285
        %p480 = pneg %p309
        %p481 = pneg %p306
        %p482 = pneg %p335
        %p483 = pneg %p332
        %s484 = sand.u32 %s322, 1
        %s485 = scalar_lea.sflag [#allocation9], %s484
        %s486 = sand.u32 %s322, 1
        %s487 = smul.addr %s486, 8
        %s488 = scalar_lea.vmem [#allocation12], %s487
        %s489 = smul.u32 2, %s31
        %s490 = smul.u32 2, %s31
        %p491 = scmp.lt.s32.totalorder %s490, 3
        %s492 = scalar_select %p491, %s490, 3
        %s493 = smul.addr %s492, 8
        %s494 = scalar_lea.vmem %s1, %s493
        %s495 = smul.u32 2, %s31
        %v496 = vld [vmem:[%s437] sm:$0xff]
        %v497 = vld [vmem:[%s437 + $0x8] sm:$0xff]
        %500 = vrot.lane.b32.xlu0 %v496, 2
        %v501 = vpop.permute.xlu0 %500
        %502 = vrot.lane.b32.xlu0 %v497, 2
        %v503 = vpop.permute.xlu0 %502
        %vm506 = vcmask 146448
        %507 = vst.msk [vmem:[#allocation2] sm:$0xff] %vm506, %v501
        %508 = vst.msk [vmem:[#allocation2 + $0x8] sm:$0xff] %vm506, %v503
        %v509 = vld [vmem:[%s494] sm:$0xff]
        %511 = vrot.lane.b32.xlu0 %v509, 1
        %v512 = vpop.permute.xlu0 %511
        %vm514 = vcmask 154632
        %515 = vst.msk [vmem:[#allocation3] sm:$0xff] %vm514, %v512
        %s516 = scalar_lea.vmem %s437, 16 [#allocation7]
        %v517 = vld [vmem:[%s516] sm:$0xff]
        %v518 = vld [vmem:[%s516 + $0x8] sm:$0xff]
        %521 = vrot.lane.b32.xlu0 %v517, 22
        %v522 = vpop.permute.xlu0 %521
        %523 = vrot.lane.b32.xlu0 %v518, 22
        %v524 = vpop.permute.xlu0 %523
        %vm527 = vcmask 310448
        %528 = vst.msk [vmem:[#allocation2] sm:$0xff] %vm527, %v522
        %529 = vst.msk [vmem:[#allocation2 + $0x8] sm:$0xff] %vm527, %v524
        %s530 = scalar_lea.vmem %s494, 8
        %v531 = vld [vmem:[%s530] sm:$0xff]
        %533 = vrot.lane.b32.xlu0 %v531, 21
        %v534 = vpop.permute.xlu0 %533
        %vm536 = vcmask 318632
        %537 = vst.msk [vmem:[#allocation3] sm:$0xff] %vm536, %v534
        %v538 = vld [vmem:[%s2] sm:$0xff]
        %v539 = vld [vmem:[%s2 + $0x8] sm:$0xff]
        %v540 = vld [vmem:[#allocation2] sm:$0xff]
        %v541 = vld [vmem:[#allocation2 + $0x8] sm:$0xff]
        %vm542 = vcmask 130048
        %v544 = vsel %vm542, %v538, 0
        %v547 = vsel %vm542, %v539, 0
        %549 = vmatprep.subr.mxu0 0.0
        %550 = vmatpush1.msra.mxu0 %v540
        %551 = vmatprep.subr.mxu0 0.0
        %552 = vmatpush1.msra.mxu0 %v541
        %553 = vmatprep.subr.mxu0 0.0
        %554 = vmatpush1.msra.mxu0 0.0
        %555 = vmatprep.subr.mxu0 0.0
        %556 = vmatpush1.msra.mxu0 0.0
        %557 = vmatprep.subr.mxu0 0.0
        %558 = vmatpush1.msra.mxu0 0.0
        %559 = vmatprep.subr.mxu0 0.0
        %560 = vmatpush1.msra.mxu0 0.0
        %561 = vmatprep.subr.mxu0 0.0
        %562 = vmatpush1.msra.mxu0 0.0
        %563 = vmatprep.subr.mxu0 0.0
        %564 = vmatpush1.msra.mxu0 0.0
        %565 = vmatprep.subr.mxu0 0.0
        %566 = vmatpush1.msra.mxu0 0.0
        %567 = vmatprep.subr.mxu0 0.0
        %568 = vmatpush1.msra.mxu0 0.0
        %569 = vmatprep.subr.mxu0 0.0
        %570 = vmatpush1.msra.mxu0 0.0
        %571 = vmatprep.subr.mxu0 0.0
        %572 = vmatpush1.msra.mxu0 0.0
        %573 = vmatprep.subr.mxu0 0.0
        %574 = vmatpush1.msra.mxu0 0.0
        %575 = vmatprep.subr.mxu0 0.0
        %576 = vmatpush1.msra.mxu0 0.0
        %577 = vmatprep.subr.mxu0 0.0
        %578 = vmatpush1.msra.mxu0 0.0
        %579 = vmatprep.subr.mxu0 0.0
        %580 = vmatpush1.msra.mxu0 0.0
        %581 = vmatprep.subr.mxu0 0.0
        %582 = vmatpush1.msra.mxu0 0.0
        %583 = vmatprep.subr.mxu0 0.0
        %584 = vmatpush1.msra.mxu0 0.0
        %585 = vmatprep.subr.mxu0 0.0
        %586 = vmatpush1.msra.mxu0 0.0
        %587 = vmatprep.subr.mxu0 0.0
        %588 = vmatpush1.msra.mxu0 0.0
        %589 = vmatprep.subr.mxu0 0.0
        %590 = vmatpush1.msra.mxu0 0.0
        %591 = vmatprep.subr.mxu0 0.0
        %592 = vmatpush1.msra.mxu0 0.0
        %593 = vmatprep.subr.mxu0 0.0
        %594 = vmatpush1.msra.mxu0 0.0
        %595 = vmatprep.subr.mxu0 0.0
        %596 = vmatpush1.msra.mxu0 0.0
        %597 = vmatprep.subr.mxu0 0.0
        %598 = vmatpush1.msra.mxu0 0.0
        %599 = vmatprep.subr.mxu0 0.0
        %600 = vmatpush1.msra.mxu0 0.0
        %601 = vmatprep.subr.mxu0 0.0
        %602 = vmatpush1.msra.mxu0 0.0
        %603 = vmatprep.subr.mxu0 0.0
        %604 = vmatpush1.msra.mxu0 0.0
        %605 = vmatprep.subr.mxu0 0.0
        %606 = vmatpush1.msra.mxu0 0.0
        %607 = vmatprep.subr.mxu0 0.0
        %608 = vmatpush1.msra.mxu0 0.0
        %609 = vmatprep.subr.mxu0 0.0
        %610 = vmatpush1.msra.mxu0 0.0
        %611 = vmatprep.subr.mxu0 0.0
        %612 = vmatpush1.msra.mxu0 0.0
        %613 = vmatprep.mubr.f32.mxu0 0.0
        %614 = vmatmul.mubr.f32.gmra.mrb[0].mxu0 %v544
        %v615 = vpop.f32.mrb[0].mxu0
        %v616 = vadd.f32 0.0, %v615
        %v617 = vpop.f32.mrb[0].mxu0
        %618 = vmatprep.mubr.f32.mxu0 0.0
        %619 = vmatmul.mubr.f32.gmra.mrb[0].mxu0 %v547
        %v620 = vpop.f32.mrb[0].mxu0
        %v621 = vadd.f32 0.0, %v620
        %v622 = vpop.f32.mrb[0].mxu0
        %623 = vdwg.mxu0
        %v624 = vld [vmem:[%s3] sm:$0xff]
        %v625 = vld [vmem:[%s4] sm:$0x1]
        %vm626 = vcmp.ne.f32.partialorder %v625, 0.0
        %628 = vset.pattern.permute.xlu0 0
        %629 = vperm.xlu0 %628, %v624
        %v630 = vpop.permute.xlu0 %629
        %v632 = vadd.f32 %v616, %v630
        %v633 = vsel %vm626, 1, 0
        %v634 = vlaneseq
        %v635 = vshrl.u32 %v634, 7
        %v636 = vsub.s32 0, %v635
        %v637 = vrot.slane %v633, %v636
        %vm638 = vcmp.eq.s32.totalorder %v637, 1
        %v639 = vsel %vm638, %v632, 0.0
        %s640 = scalar_lea.vmem %s4, 1
        %v641 = vld [vmem:[%s640] sm:$0x1]
        %vm642 = vcmp.ne.f32.partialorder %v641, 0.0
        %v643 = vadd.f32 %v621, %v630
        %v644 = vsel %vm642, 1, 0
        %v645 = vlaneseq
        %v646 = vshrl.u32 %v645, 7
        %v647 = vsub.s32 0, %v646
        %v648 = vrot.slane %v644, %v647
        %vm649 = vcmp.eq.s32.totalorder %v648, 1
        %v650 = vsel %vm649, %v643, 0.0
        %v651 = vadd.f32 %v639, %v650
        %vm652 = vcmask 310272
        %653 = vst.msk [vmem:[#allocation5] sm:$0xff] %vm652, %v651
        %v654 = vld [vmem:[%s5] sm:$0x1]
        %vm655 = vcmp.ne.f32.partialorder %v654, 0.0
        %v656 = vld [vmem:[#allocation3] sm:$0xff]
        %v657 = vsel %vm655, 1, 0
        %v658 = vlaneseq
        %v659 = vshrl.u32 %v658, 7
        %v660 = vsub.s32 0, %v659
        %v661 = vrot.slane %v657, %v660
        %vm662 = vcmp.eq.s32.totalorder %v661, 1
        %v663 = vsel %vm662, %v656, 0.0
        %664 = vst.msk [vmem:[#allocation5 + $0x8] sm:$0xff] %vm652, %v663
        %666 = vrot.lane.b32.xlu0 %v651, 127
        %v667 = vpop.permute.xlu0 %666
        %669 = vst.msk [vmem:[#allocation5 + $0x10] sm:$0xff] %vm652, %v667
        %v670 = vld [vmem:[%s5] sm:$0x1]
        %vm671 = vcmp.ne.f32.partialorder %v670, 0.0
        %v672 = vld [vmem:[#allocation3] sm:$0xff]
        %v673 = vsel %vm671, 1, 0
        %v674 = vlaneseq
        %v675 = vshrl.u32 %v674, 7
        %v676 = vsub.s32 0, %v675
        %v677 = vrot.slane %v673, %v676
        %vm678 = vcmp.eq.s32.totalorder %v677, 1
        %v679 = vsel %vm678, %v672, 0.0
        %681 = vrot.lane.b32.xlu0 %v679, 127
        %v682 = vpop.permute.xlu0 %681
        %684 = vst.msk [vmem:[#allocation5 + $0x18] sm:$0xff] %vm652, %v682
        %685 = vrot.lane.b32.xlu0 %v651, 126
        %v686 = vpop.permute.xlu0 %685
        %688 = vst.msk [vmem:[#allocation5 + $0x20] sm:$0xff] %vm652, %v686
        %v689 = vld [vmem:[%s5] sm:$0x1]
        %vm690 = vcmp.ne.f32.partialorder %v689, 0.0
        %v691 = vld [vmem:[#allocation3] sm:$0xff]
        %v692 = vsel %vm690, 1, 0
        %v693 = vlaneseq
        %v694 = vshrl.u32 %v693, 7
        %v695 = vsub.s32 0, %v694
        %v696 = vrot.slane %v692, %v695
        %vm697 = vcmp.eq.s32.totalorder %v696, 1
        %v698 = vsel %vm697, %v691, 0.0
        %700 = vrot.lane.b32.xlu0 %v698, 126
        %v701 = vpop.permute.xlu0 %700
        %703 = vst.msk [vmem:[#allocation5 + $0x28] sm:$0xff] %vm652, %v701
        %v704 = vld [vmem:[%s7] sm:$0xff]
        %v705 = vld [vmem:[#allocation5] sm:$0xff]
        %v706 = vld [vmem:[#allocation5 + $0x8] sm:$0xff]
        %v707 = vld [vmem:[#allocation5 + $0x10] sm:$0xff]
        %v708 = vld [vmem:[#allocation5 + $0x18] sm:$0xff]
        %v709 = vld [vmem:[#allocation5 + $0x20] sm:$0xff]
        %v710 = vld [vmem:[#allocation5 + $0x28] sm:$0xff]
        %vm711 = vcmask 392192
        %v713 = vsel %vm711, %v704, 0
        %715 = vmatprep.subr.mxu0 0.0
        %716 = vmatpush1.msra.mxu0 %v705
        %717 = vmatprep.subr.mxu0 0.0
        %718 = vmatpush1.msra.mxu0 %v706
        %719 = vmatprep.subr.mxu0 0.0
        %720 = vmatpush1.msra.mxu0 %v707
        %721 = vmatprep.subr.mxu0 0.0
        %722 = vmatpush1.msra.mxu0 %v708
        %723 = vmatprep.subr.mxu0 0.0
        %724 = vmatpush1.msra.mxu0 %v709
        %725 = vmatprep.subr.mxu0 0.0
        %726 = vmatpush1.msra.mxu0 %v710
        %727 = vmatprep.subr.mxu0 0.0
        %728 = vmatpush1.msra.mxu0 0.0
        %729 = vmatprep.subr.mxu0 0.0
        %730 = vmatpush1.msra.mxu0 0.0
        %731 = vmatprep.subr.mxu0 0.0
        %732 = vmatpush1.msra.mxu0 0.0
        %733 = vmatprep.subr.mxu0 0.0
        %734 = vmatpush1.msra.mxu0 0.0
        %735 = vmatprep.subr.mxu0 0.0
        %736 = vmatpush1.msra.mxu0 0.0
        %737 = vmatprep.subr.mxu0 0.0
        %738 = vmatpush1.msra.mxu0 0.0
        %739 = vmatprep.subr.mxu0 0.0
        %740 = vmatpush1.msra.mxu0 0.0
        %741 = vmatprep.subr.mxu0 0.0
        %742 = vmatpush1.msra.mxu0 0.0
        %743 = vmatprep.subr.mxu0 0.0
        %744 = vmatpush1.msra.mxu0 0.0
        %745 = vmatprep.subr.mxu0 0.0
        %746 = vmatpush1.msra.mxu0 0.0
        %747 = vmatprep.subr.mxu0 0.0
        %748 = vmatpush1.msra.mxu0 0.0
        %749 = vmatprep.subr.mxu0 0.0
        %750 = vmatpush1.msra.mxu0 0.0
        %751 = vmatprep.subr.mxu0 0.0
        %752 = vmatpush1.msra.mxu0 0.0
        %753 = vmatprep.subr.mxu0 0.0
        %754 = vmatpush1.msra.mxu0 0.0
        %755 = vmatprep.subr.mxu0 0.0
        %756 = vmatpush1.msra.mxu0 0.0
        %757 = vmatprep.subr.mxu0 0.0
        %758 = vmatpush1.msra.mxu0 0.0
        %759 = vmatprep.subr.mxu0 0.0
        %760 = vmatpush1.msra.mxu0 0.0
        %761 = vmatprep.subr.mxu0 0.0
        %762 = vmatpush1.msra.mxu0 0.0
        %763 = vmatprep.subr.mxu0 0.0
        %764 = vmatpush1.msra.mxu0 0.0
        %765 = vmatprep.subr.mxu0 0.0
        %766 = vmatpush1.msra.mxu0 0.0
        %767 = vmatprep.subr.mxu0 0.0
        %768 = vmatpush1.msra.mxu0 0.0
        %769 = vmatprep.subr.mxu0 0.0
        %770 = vmatpush1.msra.mxu0 0.0
        %771 = vmatprep.subr.mxu0 0.0
        %772 = vmatpush1.msra.mxu0 0.0
        %773 = vmatprep.subr.mxu0 0.0
        %774 = vmatpush1.msra.mxu0 0.0
        %775 = vmatprep.subr.mxu0 0.0
        %776 = vmatpush1.msra.mxu0 0.0
        %777 = vmatprep.subr.mxu0 0.0
        %778 = vmatpush1.msra.mxu0 0.0
        %779 = vmatprep.mubr.f32.mxu0 0.0
        %780 = vmatmul.mubr.f32.gmra.mrb[0].mxu0 %v713
        %v781 = vpop.f32.mrb[0].mxu0
        %v782 = vadd.f32 0.0, %v781
        %v783 = vpop.f32.mrb[0].mxu0
        %784 = vdwg.mxu0
        %v785 = vld [vmem:[%s8] sm:$0xff]
        %787 = vset.pattern.permute.xlu0 0
        %788 = vperm.xlu0 %787, %v785
        %v789 = vpop.permute.xlu0 %788
        %v791 = vmul.f32 %v782, %v789
        %v792 = vld [vmem:[%s9] sm:$0xff]
        %794 = vset.pattern.permute.xlu0 0
        %795 = vperm.xlu0 %794, %v792
        %v796 = vpop.permute.xlu0 %795
        %v798 = vadd.f32 %v791, %v796
        %v799 = vmax.f32 %v798, 0.0
        %801 = vrot.lane.b32.xlu0 %v799, 1
        %v802 = vpop.permute.xlu0 %801
        %vm804 = vcmask 318472
        %805 = vst.msk [vmem:[#allocation4] sm:$0xff] %vm804, %v802
        %v806 = vld [vmem:[#allocation10] sm:$0x1]
        %vm807 = vcmp.ne.f32.partialorder %v806, 0.0
        %v808 = vld [vmem:[#allocation4] sm:$0xff]
        %v809 = vsel %vm807, 1, 0
        %v810 = vlaneseq
        %v811 = vshrl.u32 %v810, 7
        %v812 = vsub.s32 0, %v811
        %v813 = vrot.slane %v809, %v812
        %vm814 = vcmp.eq.s32.totalorder %v813, 1
        %v815 = vsel %vm814, %v808, 0.0
        %816 = vst.msk [vmem:[#allocation6] sm:$0xff] %vm652, %v815
        %v817 = vld [vmem:[#allocation10] sm:$0x1]
        %vm818 = vcmp.ne.f32.partialorder %v817, 0.0
        %v819 = vld [vmem:[#allocation4] sm:$0xff]
        %v820 = vsel %vm818, 1, 0
        %v821 = vlaneseq
        %v822 = vshrl.u32 %v821, 7
        %v823 = vsub.s32 0, %v822
        %v824 = vrot.slane %v820, %v823
        %vm825 = vcmp.eq.s32.totalorder %v824, 1
        %v826 = vsel %vm825, %v819, 0.0
        %828 = vrot.lane.b32.xlu0 %v826, 127
        %v829 = vpop.permute.xlu0 %828
        %831 = vst.msk [vmem:[#allocation6 + $0x8] sm:$0xff] %vm652, %v829
        %v832 = vld [vmem:[#allocation10] sm:$0x1]
        %vm833 = vcmp.ne.f32.partialorder %v832, 0.0
        %v834 = vld [vmem:[#allocation4] sm:$0xff]
        %v835 = vsel %vm833, 1, 0
        %v836 = vlaneseq
        %v837 = vshrl.u32 %v836, 7
        %v838 = vsub.s32 0, %v837
        %v839 = vrot.slane %v835, %v838
        %vm840 = vcmp.eq.s32.totalorder %v839, 1
        %v841 = vsel %vm840, %v834, 0.0
        %843 = vrot.lane.b32.xlu0 %v841, 126
        %v844 = vpop.permute.xlu0 %843
        %846 = vst.msk [vmem:[#allocation6 + $0x10] sm:$0xff] %vm652, %v844
        %v847 = vld [vmem:[%s10] sm:$0xff]
        %v848 = vld [vmem:[#allocation6] sm:$0xff]
        %v849 = vld [vmem:[#allocation6 + $0x8] sm:$0xff]
        %v850 = vld [vmem:[#allocation6 + $0x10] sm:$0xff]
        %vm851 = vcmask 195584
        %v853 = vsel %vm851, %v847, 0
        %855 = vmatprep.subr.mxu0 0.0
        %856 = vmatpush1.msra.mxu0 %v848
        %857 = vmatprep.subr.mxu0 0.0
        %858 = vmatpush1.msra.mxu0 %v849
        %859 = vmatprep.subr.mxu0 0.0
        %860 = vmatpush1.msra.mxu0 %v850
        %861 = vmatprep.subr.mxu0 0.0
        %862 = vmatpush1.msra.mxu0 0.0
        %863 = vmatprep.subr.mxu0 0.0
        %864 = vmatpush1.msra.mxu0 0.0
        %865 = vmatprep.subr.mxu0 0.0
        %866 = vmatpush1.msra.mxu0 0.0
        %867 = vmatprep.subr.mxu0 0.0
        %868 = vmatpush1.msra.mxu0 0.0
        %869 = vmatprep.subr.mxu0 0.0
        %870 = vmatpush1.msra.mxu0 0.0
        %871 = vmatprep.subr.mxu0 0.0
        %872 = vmatpush1.msra.mxu0 0.0
        %873 = vmatprep.subr.mxu0 0.0
        %874 = vmatpush1.msra.mxu0 0.0
        %875 = vmatprep.subr.mxu0 0.0
        %876 = vmatpush1.msra.mxu0 0.0
        %877 = vmatprep.subr.mxu0 0.0
        %878 = vmatpush1.msra.mxu0 0.0
        %879 = vmatprep.subr.mxu0 0.0
        %880 = vmatpush1.msra.mxu0 0.0
        %881 = vmatprep.subr.mxu0 0.0
        %882 = vmatpush1.msra.mxu0 0.0
        %883 = vmatprep.subr.mxu0 0.0
        %884 = vmatpush1.msra.mxu0 0.0
        %885 = vmatprep.subr.mxu0 0.0
        %886 = vmatpush1.msra.mxu0 0.0
        %887 = vmatprep.subr.mxu0 0.0
        %888 = vmatpush1.msra.mxu0 0.0
        %889 = vmatprep.subr.mxu0 0.0
        %890 = vmatpush1.msra.mxu0 0.0
        %891 = vmatprep.subr.mxu0 0.0
        %892 = vmatpush1.msra.mxu0 0.0
        %893 = vmatprep.subr.mxu0 0.0
        %894 = vmatpush1.msra.mxu0 0.0
        %895 = vmatprep.subr.mxu0 0.0
        %896 = vmatpush1.msra.mxu0 0.0
        %897 = vmatprep.subr.mxu0 0.0
        %898 = vmatpush1.msra.mxu0 0.0
        %899 = vmatprep.subr.mxu0 0.0
        %900 = vmatpush1.msra.mxu0 0.0
        %901 = vmatprep.subr.mxu0 0.0
        %902 = vmatpush1.msra.mxu0 0.0
        %903 = vmatprep.subr.mxu0 0.0
        %904 = vmatpush1.msra.mxu0 0.0
        %905 = vmatprep.subr.mxu0 0.0
        %906 = vmatpush1.msra.mxu0 0.0
        %907 = vmatprep.subr.mxu0 0.0
        %908 = vmatpush1.msra.mxu0 0.0
        %909 = vmatprep.subr.mxu0 0.0
        %910 = vmatpush1.msra.mxu0 0.0
        %911 = vmatprep.subr.mxu0 0.0
        %912 = vmatpush1.msra.mxu0 0.0
        %913 = vmatprep.subr.mxu0 0.0
        %914 = vmatpush1.msra.mxu0 0.0
        %915 = vmatprep.subr.mxu0 0.0
        %916 = vmatpush1.msra.mxu0 0.0
        %917 = vmatprep.subr.mxu0 0.0
        %918 = vmatpush1.msra.mxu0 0.0
        %919 = vmatprep.mubr.f32.mxu0 0.0
        %920 = vmatmul.mubr.f32.gmra.mrb[0].mxu0 %v853
        %v921 = vpop.f32.mrb[0].mxu0
        %v922 = vadd.f32 0.0, %v921
        %v923 = vpop.f32.mrb[0].mxu0
        %924 = vdwg.mxu0
        %v925 = vld [vmem:[%s11] sm:$0xff]
        %927 = vset.pattern.permute.xlu0 0
        %928 = vperm.xlu0 %927, %v925
        %v929 = vpop.permute.xlu0 %928
        %v931 = vmul.f32 %v922, %v929
        %v932 = vld [vmem:[%s12] sm:$0xff]
        %934 = vset.pattern.permute.xlu0 0
        %935 = vperm.xlu0 %934, %v932
        %v936 = vpop.permute.xlu0 %935
        %v938 = vadd.f32 %v931, %v936
        %v939 = vmax.f32 %v938, 0.0
        %940 = vst.msk [vmem:[%s488] sm:$0xff] %vm652, %v939
        %s941 = sand.u32 %s322, 1
        %s942 = scalar_lea.sflag [#allocation9], %s941
        %s943 = sand.u32 %s322, 1
        %s944 = smul.addr %s943, 8
        %s945 = scalar_lea.vmem [#allocation12], %s944
        // Predicated region
        $region81: #{tpu_custom_call.1} parent=71 // pred_check
          %p946 = pneg %p332
        $region82: #{tpu_custom_call.1} parent=71 // pred_check_branch
          %948 = sbr.rel (%p946) target = $region84
        $region83: #{tpu_custom_call.1} parent=71 // pred_region
          %s950 = ssub.s32 128, 128
          %951 = vsyncadd %s942, %s950
          %s952 = smul.addr %s31, 128
          %s953 = scalar_lea.hbm %s13, %s952
          %s955 = sshll.u32 %s945, 4
          %s956 = int_to_ptr.vmem [resolvable:$true] %s955
          %958 = dma.vmem_to_hbm [thread:$0]  %s956, 128, %s953, %s942
        $region84: #{tpu_custom_call.1} parent=71 // pred_fallthru
          _
      $region72: #{tpu_custom_call.1} parent=5 // pred_fallthru
        _
      %p959 = scmp.le.s32.totalorder 2, %s26
      // Predicated region
      $region85: #{tpu_custom_call.1} parent=5 // pred_check
        %p960 = pneg %p959
      $region86: #{tpu_custom_call.1} parent=5 // pred_check_branch
        %962 = sbr.rel (%p960) target = $region88
      $region87: #{tpu_custom_call.1} parent=5 // pred_region
        %s963 = ssub.s32 %s26, 2
        // Predicated region
        $region89: #{tpu_custom_call.1} parent=87 // pred_check
          %p964 = pneg %p338
        $region90: #{tpu_custom_call.1} parent=87 // pred_check_branch
          %966 = sbr.rel (%p964) target = $region92
        $region91: #{tpu_custom_call.1} parent=87 // pred_region
          %s967 = sand.u32 %s323, 1
          %s968 = scalar_lea.sflag [#allocation9], %s967
          %s969 = sand.u32 %s323, 1
          %s970 = smul.addr %s969, 8
          %s971 = scalar_lea.vmem [#allocation12], %s970
          %972 = dma.done %s968, 128
        $region92: #{tpu_custom_call.1} parent=87 // pred_fallthru
          _
      $region88: #{tpu_custom_call.1} parent=5 // pred_fallthru
        _
    $region6: #{tpu_custom_call.1} parent=1 // loop_footer
      %s30 = sadd.s32 1, %s26
    $region7: #{tpu_custom_call.1} parent=1 // loop_footer_branch
      %25 = sbr.rel target = $region3
    $region8: #{tpu_custom_call.1} parent=1 // loop_exit
      _
    %973 = vsyncpa [#allocation8], 1
    %s974 = scalar_lea.sflag [#allocation8], 1
    %975 = vsyncpa %s974, 1
    %976 = vsyncpa [#allocation11], 1
    %977 = vsyncpa [#allocation9], 1
    %s978 = scalar_lea.sflag [#allocation9], 1
    %979 = vsyncpa %s978, 1

</llo_original>
